<compile_context>
chip_gen: v7x
topology: tpu7x:2x2x1
jax: 0.10.0
libtpu: 0.0.40
codegen_flags: <defaults>
</compile_context>

<pallas_src>
import functools

import jax
import jax.numpy as jnp
from jax.experimental import pallas as pl
from jax.experimental.pallas import tpu as pltpu

NEG_SLOPE = 0.2   # GATConv default negative_slope
BN_EPS = 1e-5     # nn.BatchNorm1d default eps
NEG_INF = -1e30


# ----------------------------------------------------------------------------
# Single fused kernel: 3x (GATConv + BN + ReLU) + global_max_pool + Linear
# ----------------------------------------------------------------------------
def _gat_fused_kernel(x_ref, adj_ref, onehot_ref,
                      w1_ref, a1_ref, b1_ref, g1_ref, be1_ref,
                      w2_ref, a2_ref, b2_ref, g2_ref, be2_ref,
                      w3_ref, a3_ref, b3_ref, g3_ref, be3_ref,
                      wfc_ref, bfc_ref,
                      out_ref,
                      h1_ref, h2_ref, h3_ref,
                      *, heads, f_outs):
    # Additive adjacency mask, computed ONCE and reused by all layers / heads.
    adj_bias = jnp.where(adj_ref[...] > 0.0, 0.0, NEG_INF)           # [N, N]

    def gat_bn_relu(x, w_ref, a_ref, b_ref, g_ref, be_ref, scr_ref, f_out):
        # Feature transform on the MXU (bf16 inputs, f32 accumulation).
        h = jnp.dot(x.astype(jnp.bfloat16), w_ref[...].astype(jnp.bfloat16),
                    preferred_element_type=jnp.float32)              # [N, H*f_out]
        # All per-head attention logits in one tiny MXU matmul instead of
        # 2*heads cross-lane (XLU) reductions: [N, H*f_out] @ [H*f_out, 2H].
        alphas = jnp.dot(h, a_ref[...], preferred_element_type=jnp.float32)
        h_bf = h.astype(jnp.bfloat16)
        bias, gamma, beta = b_ref[...], g_ref[...], be_ref[...]

        for hd in range(heads):                                      # static (=2)
            lo, hi = hd * f_out, (hd + 1) * f_out
            a_src = alphas[:, 2 * hd]                                # [N]  per source j
            a_dst = alphas[:, 2 * hd + 1]                            # [N]  per dest   i
            e = a_dst[:, None] + a_src[None, :]                      # [N, N]  e[i, j]
            e = jnp.where(e > 0, e, NEG_SLOPE * e)                   # LeakyReLU
            e = e + adj_bias                                         # mask non-edges
            e_max = jnp.max(e, axis=-1, keepdims=True)
            p = jnp.exp(e - e_max)                                   # masked -> 0.0
            rowsum = jnp.sum(p, axis=-1, keepdims=True)              # [N, 1]
            # Unnormalized aggregation on the MXU (bf16), then normalize the
            # small [N, f_out] result with an EUP approx reciprocal.
            acc = jnp.dot(p.astype(jnp.bfloat16), h_bf[:, lo:hi],
                          preferred_element_type=jnp.float32)        # [N, f_out]
            acc = acc * pl.reciprocal(rowsum, approx=True) + bias[:, lo:hi]
            # BatchNorm1d (training-mode batch stats). Per-channel, so it can
            # be applied per head slice; one-pass variance.
            mean = jnp.mean(acc, axis=0, keepdims=True)
            var = jnp.mean(acc * acc, axis=0, keepdims=True) - mean * mean
            acc = (acc - mean) * jax.lax.rsqrt(var + BN_EPS)
            acc = acc * gamma[:, lo:hi] + beta[:, lo:hi]
            # Write this head's slice into contiguous VMEM scratch (no concat).
            scr_ref[:, lo:hi] = jnp.maximum(acc, 0.0)                # ReLU
        return scr_ref[...]

    x1 = gat_bn_relu(x_ref[...], w1_ref, a1_ref, b1_ref, g1_ref, be1_ref,
                     h1_ref, f_outs[0])
    x2 = gat_bn_relu(x1, w2_ref, a2_ref, b2_ref, g2_ref, be2_ref,
                     h2_ref, f_outs[1])
    x3 = gat_bn_relu(x2, w3_ref, a3_ref, b3_ref, g3_ref, be3_ref,
                     h3_ref, f_outs[2])

    # global_max_pool: vectorized masked max over nodes, then final Linear.
    onehot = onehot_ref[...]                                         # [G, N]
    masked = jnp.where(onehot[:, :, None] > 0.0, x3[None, :, :], NEG_INF)
    pooled = jnp.max(masked, axis=1)                                 # [G, C]
    out_ref[...] = (jnp.dot(pooled, wfc_ref[...],
                            preferred_element_type=jnp.float32) + bfc_ref[...])


# ----------------------------------------------------------------------------
# Wrapper
# ----------------------------------------------------------------------------
def _att_matrix(att_src, att_dst):
    """Block matrix A so that h @ A = [.., alpha_src_h, alpha_dst_h, ..]."""
    heads, f_out = att_src.shape
    a = jnp.zeros((heads * f_out, 2 * heads), jnp.float32)
    for hd in range(heads):
        a = a.at[hd * f_out:(hd + 1) * f_out, 2 * hd].set(att_src[hd])
        a = a.at[hd * f_out:(hd + 1) * f_out, 2 * hd + 1].set(att_dst[hd])
    return a


def gat_forward(params, x, adj, onehot):
    p = params
    n = x.shape[0]
    n_graphs = onehot.shape[0]

    # Pad input features 3 -> 8 (sublane alignment); fold zero rows into w1.
    f_in, f_pad = x.shape[1], 8
    x_p = jnp.pad(x, ((0, 0), (0, f_pad - f_in)))
    w1_p = jnp.pad(p["w1"], ((0, f_pad - f_in), (0, 0)))

    a1 = _att_matrix(p["as1"], p["ad1"])
    a2 = _att_matrix(p["as2"], p["ad2"])
    a3 = _att_matrix(p["as3"], p["ad3"])

    kernel = functools.partial(_gat_fused_kernel, heads=2, f_outs=(16, 32, 64))
    vmem = pl.BlockSpec(memory_space=pltpu.MemorySpace.VMEM)
    return pl.pallas_call(
        kernel,
        out_shape=jax.ShapeDtypeStruct((n_graphs, 10), jnp.float32),
        in_specs=[vmem] * 20,
        out_specs=vmem,
        scratch_shapes=[pltpu.VMEM((n, 32), jnp.float32),
                        pltpu.VMEM((n, 64), jnp.float32),
                        pltpu.VMEM((n, 128), jnp.float32)],
        compiler_params=pltpu.CompilerParams(
            vmem_limit_bytes=32 * 1024 * 1024),
    )(x_p, adj, onehot,
      w1_p, a1, p["b1"], p["g1"], p["be1"],
      p["w2"], a2, p["b2"], p["g2"], p["be2"],
      p["w3"], a3, p["b3"], p["g3"], p["be3"],
      p["wfc"], p["bfc"])


# ----------------------------------------------------------------------------
# Parameter init (deterministic, synthetic)
# ----------------------------------------------------------------------------
def init_params(key):
    def nrm(k, shape, scale=0.1):
        return scale * jax.random.normal(k, shape, dtype=jnp.float32)

    ks = jax.random.split(key, 16)
    return {
        # GATConv(3, 16, heads=2): lin weight stored transposed [F_in, H*F_out]
        "w1": nrm(ks[0], (3, 32)), "as1": nrm(ks[1], (2, 16)),
        "ad1": nrm(ks[2], (2, 16)), "b1": nrm(ks[3], (1, 32)),
        # GATConv(32, 32, heads=2)
        "w2": nrm(ks[4], (32, 64)), "as2": nrm(ks[5], (2, 32)),
        "ad2": nrm(ks[6], (2, 32)), "b2": nrm(ks[7], (1, 64)),
        # GATConv(64, 64, heads=2)
        "w3": nrm(ks[8], (64, 128)), "as3": nrm(ks[9], (2, 64)),
        "ad3": nrm(ks[10], (2, 64)), "b3": nrm(ks[11], (1, 128)),
        # BatchNorm1d affine params (PyTorch default init: gamma=1, beta=0)
        "g1": jnp.ones((1, 32), jnp.float32), "be1": jnp.zeros((1, 32), jnp.float32),
        "g2": jnp.ones((1, 64), jnp.float32), "be2": jnp.zeros((1, 64), jnp.float32),
        "g3": jnp.ones((1, 128), jnp.float32), "be3": jnp.zeros((1, 128), jnp.float32),
        # Linear(128, 10)
        "wfc": nrm(ks[12], (128, 10)), "bfc": nrm(ks[13], (1, 10)),
    }


if __name__ == "__main__":
    key = jax.random.PRNGKey(0)
    k_x, k_p = jax.random.split(key)

    # Small synthetic batch of 2 graphs, 8 nodes each, 3 input features.
    N_PER_GRAPH, N_GRAPHS = 8, 2
    N = N_PER_GRAPH * N_GRAPHS
    x = jax.random.normal(k_x, (N, 3), dtype=jnp.float32)

    # Ring graph inside each sub-graph (both directions) + one chord.
    src_list, dst_list = [], []
    for g in range(N_GRAPHS):
        off = g * N_PER_GRAPH
        for i in range(N_PER_GRAPH):
            j = (i + 1) % N_PER_GRAPH
            src_list += [off + i, off + j]
            dst_list += [off + j, off + i]
        src_list += [off + 0, off + 3]
        dst_list += [off + 3, off + 0]
    edge_index = jnp.array([src_list, dst_list], dtype=jnp.int32)    # [2, E]
    batch = jnp.array([g for g in range(N_GRAPHS) for _ in range(N_PER_GRAPH)],
                      dtype=jnp.int32)                               # [N]

    # Dense adjacency mask adj[dst, src], with self-loops (GATConv default).
    adj = jnp.zeros((N, N), jnp.float32).at[edge_index[1], edge_index[0]].set(1.0)
    adj = jnp.maximum(adj, jnp.eye(N, dtype=jnp.float32))

    # Graph-membership one-hot for global_max_pool: [n_graphs, N].
    onehot = (batch[None, :] == jnp.arange(N_GRAPHS)[:, None]).astype(jnp.float32)

    params = init_params(k_p)
    out = gat_forward(params, x, adj, onehot)                        # [2, 10]
    jax.block_until_ready(out)
    assert out.shape == (N_GRAPHS, 10)
    print("KERNEL_OK")
</pallas_src>

<mosaic_0001>
module attributes {stable_mosaic.version = 11 : i64} {
  func.func @_gat_fused_kernel(%arg0: memref<16x8xf32, #tpu.memory_space<vmem>>, %arg1: memref<16x16xf32, #tpu.memory_space<vmem>>, %arg2: memref<2x16xf32, #tpu.memory_space<vmem>>, %arg3: memref<8x32xf32, #tpu.memory_space<vmem>>, %arg4: memref<32x4xf32, #tpu.memory_space<vmem>>, %arg5: memref<1x32xf32, #tpu.memory_space<vmem>>, %arg6: memref<1x32xf32, #tpu.memory_space<vmem>>, %arg7: memref<1x32xf32, #tpu.memory_space<vmem>>, %arg8: memref<32x64xf32, #tpu.memory_space<vmem>>, %arg9: memref<64x4xf32, #tpu.memory_space<vmem>>, %arg10: memref<1x64xf32, #tpu.memory_space<vmem>>, %arg11: memref<1x64xf32, #tpu.memory_space<vmem>>, %arg12: memref<1x64xf32, #tpu.memory_space<vmem>>, %arg13: memref<64x128xf32, #tpu.memory_space<vmem>>, %arg14: memref<128x4xf32, #tpu.memory_space<vmem>>, %arg15: memref<1x128xf32, #tpu.memory_space<vmem>>, %arg16: memref<1x128xf32, #tpu.memory_space<vmem>>, %arg17: memref<1x128xf32, #tpu.memory_space<vmem>>, %arg18: memref<128x10xf32, #tpu.memory_space<vmem>>, %arg19: memref<1x10xf32, #tpu.memory_space<vmem>>, %arg20: memref<2x10xf32, #tpu.memory_space<vmem>>, %arg21: memref<16x32xf32, #tpu.memory_space<vmem>>, %arg22: memref<16x64xf32, #tpu.memory_space<vmem>>, %arg23: memref<16x128xf32, #tpu.memory_space<vmem>>) attributes {dimension_semantics = [], scalar_prefetch = 0 : i64, scratch_operands = 3 : i64, tpu.core_type = #tpu.core_type<tc>} {
    %c0 = arith.constant 0 : index
    %c0_0 = arith.constant 0 : index
    %0 = vector.load %arg1[%c0, %c0_0] : memref<16x16xf32, #tpu.memory_space<vmem>>, vector<16x16xf32>
    %cst = arith.constant 0.000000e+00 : f32
    %1 = vector.broadcast %cst : f32 to vector<16x16xf32>
    %2 = arith.cmpf ogt, %0, %1 : vector<16x16xf32>
    %cst_1 = arith.constant 0.000000e+00 : f32
    %cst_2 = arith.constant -1.000000e+30 : f32
    %3 = vector.broadcast %cst_1 : f32 to vector<16x16xf32>
    %4 = vector.broadcast %cst_2 : f32 to vector<16x16xf32>
    %5 = arith.select %2, %3, %4 : vector<16x16xi1>, vector<16x16xf32>
    %c0_3 = arith.constant 0 : index
    %c0_4 = arith.constant 0 : index
    %6 = vector.load %arg0[%c0_3, %c0_4] : memref<16x8xf32, #tpu.memory_space<vmem>>, vector<16x8xf32>
    %7 = arith.truncf %6 : vector<16x8xf32> to vector<16x8xbf16>
    %c0_5 = arith.constant 0 : index
    %c0_6 = arith.constant 0 : index
    %8 = vector.load %arg3[%c0_5, %c0_6] : memref<8x32xf32, #tpu.memory_space<vmem>>, vector<8x32xf32>
    %9 = arith.truncf %8 : vector<8x32xf32> to vector<8x32xbf16>
    %cst_7 = arith.constant dense<0.000000e+00> : vector<16x32xf32>
    %10 = tpu.matmul %7, %9, %cst_7 {dimension_numbers = #tpu.dot_dimension_numbers<[1], [0], [0], [1], [0, 0, 1, 1], [], []>} : vector<16x8xbf16>, vector<8x32xbf16>, vector<16x32xf32> -> vector<16x32xf32>
    %c0_8 = arith.constant 0 : index
    %c0_9 = arith.constant 0 : index
    %11 = vector.load %arg4[%c0_8, %c0_9] : memref<32x4xf32, #tpu.memory_space<vmem>>, vector<32x4xf32>
    %cst_10 = arith.constant dense<0.000000e+00> : vector<16x4xf32>
    %12 = tpu.matmul %10, %11, %cst_10 {dimension_numbers = #tpu.dot_dimension_numbers<[1], [0], [0], [1], [0, 0, 1, 1], [], []>} : vector<16x32xf32>, vector<32x4xf32>, vector<16x4xf32> -> vector<16x4xf32>
    %13 = arith.truncf %10 : vector<16x32xf32> to vector<16x32xbf16>
    %c0_11 = arith.constant 0 : index
    %c0_12 = arith.constant 0 : index
    %14 = vector.load %arg5[%c0_11, %c0_12] : memref<1x32xf32, #tpu.memory_space<vmem>>, vector<1x32xf32>
    %c0_13 = arith.constant 0 : index
    %c0_14 = arith.constant 0 : index
    %15 = vector.load %arg6[%c0_13, %c0_14] : memref<1x32xf32, #tpu.memory_space<vmem>>, vector<1x32xf32>
    %c0_15 = arith.constant 0 : index
    %c0_16 = arith.constant 0 : index
    %16 = vector.load %arg7[%c0_15, %c0_16] : memref<1x32xf32, #tpu.memory_space<vmem>>, vector<1x32xf32>
    %17 = vector.extract_strided_slice %12 {offsets = [0, 0], sizes = [16, 1], strides = [1, 1]} : vector<16x4xf32> to vector<16x1xf32>
    %18 = vector.shape_cast %17 : vector<16x1xf32> to vector<16xf32>
    %19 = vector.extract_strided_slice %12 {offsets = [0, 1], sizes = [16, 1], strides = [1, 1]} : vector<16x4xf32> to vector<16x1xf32>
    %20 = vector.shape_cast %19 : vector<16x1xf32> to vector<16xf32>
    %21 = vector.shape_cast %20 : vector<16xf32> to vector<16x1xf32>
    %22 = vector.shape_cast %18 : vector<16xf32> to vector<1x16xf32>
    %23 = vector.broadcast %21 : vector<16x1xf32> to vector<16x16xf32>
    %24 = vector.broadcast %22 : vector<1x16xf32> to vector<16x16xf32>
    %25 = arith.addf %23, %24 : vector<16x16xf32>
    %cst_17 = arith.constant 0.000000e+00 : f32
    %26 = vector.broadcast %cst_17 : f32 to vector<16x16xf32>
    %27 = arith.cmpf ogt, %25, %26 : vector<16x16xf32>
    %cst_18 = arith.constant 2.000000e-01 : f32
    %28 = vector.broadcast %cst_18 : f32 to vector<16x16xf32>
    %29 = arith.mulf %28, %25 : vector<16x16xf32>
    %30 = arith.select %27, %25, %29 : vector<16x16xi1>, vector<16x16xf32>
    %31 = arith.addf %30, %5 : vector<16x16xf32>
    %cst_19 = arith.constant dense<0xFF800000> : vector<16xf32>
    %32 = vector.multi_reduction <maximumf>, %31, %cst_19 [1] : vector<16x16xf32> to vector<16xf32>
    %33 = vector.shape_cast %32 : vector<16xf32> to vector<16x1xf32>
    %34 = vector.broadcast %33 : vector<16x1xf32> to vector<16x16xf32>
    %35 = arith.subf %31, %34 : vector<16x16xf32>
    %36 = math.exp %35 : vector<16x16xf32>
    %cst_20 = arith.constant dense<0.000000e+00> : vector<16xf32>
    %37 = vector.multi_reduction <add>, %36, %cst_20 [1] : vector<16x16xf32> to vector<16xf32>
    %38 = vector.shape_cast %37 : vector<16xf32> to vector<16x1xf32>
    %39 = arith.truncf %36 : vector<16x16xf32> to vector<16x16xbf16>
    %40 = vector.extract_strided_slice %13 {offsets = [0, 0], sizes = [16, 16], strides = [1, 1]} : vector<16x32xbf16> to vector<16x16xbf16>
    %cst_21 = arith.constant dense<0.000000e+00> : vector<16x16xf32>
    %41 = tpu.matmul %39, %40, %cst_21 {dimension_numbers = #tpu.dot_dimension_numbers<[1], [0], [0], [1], [0, 0, 1, 1], [], []>} : vector<16x16xbf16>, vector<16x16xbf16>, vector<16x16xf32> -> vector<16x16xf32>
    %42 = tpu.reciprocal %38 {approx = true} : vector<16x1xf32> -> vector<16x1xf32>
    %43 = vector.broadcast %42 : vector<16x1xf32> to vector<16x16xf32>
    %44 = arith.mulf %41, %43 : vector<16x16xf32>
    %45 = vector.extract_strided_slice %14 {offsets = [0, 0], sizes = [1, 16], strides = [1, 1]} : vector<1x32xf32> to vector<1x16xf32>
    %46 = vector.broadcast %45 : vector<1x16xf32> to vector<16x16xf32>
    %47 = arith.addf %44, %46 : vector<16x16xf32>
    %cst_22 = arith.constant dense<0.000000e+00> : vector<16xf32>
    %48 = vector.multi_reduction <add>, %47, %cst_22 [0] : vector<16x16xf32> to vector<16xf32>
    %49 = vector.shape_cast %48 : vector<16xf32> to vector<1x16xf32>
    %cst_23 = arith.constant 1.600000e+01 : f32
    %50 = vector.broadcast %cst_23 : f32 to vector<1x16xf32>
    %51 = arith.divf %49, %50 : vector<1x16xf32>
    %52 = arith.mulf %47, %47 : vector<16x16xf32>
    %cst_24 = arith.constant dense<0.000000e+00> : vector<16xf32>
    %53 = vector.multi_reduction <add>, %52, %cst_24 [0] : vector<16x16xf32> to vector<16xf32>
    %54 = vector.shape_cast %53 : vector<16xf32> to vector<1x16xf32>
    %cst_25 = arith.constant 1.600000e+01 : f32
    %55 = vector.broadcast %cst_25 : f32 to vector<1x16xf32>
    %56 = arith.divf %54, %55 : vector<1x16xf32>
    %57 = arith.mulf %51, %51 : vector<1x16xf32>
    %58 = arith.subf %56, %57 : vector<1x16xf32>
    %59 = vector.broadcast %51 : vector<1x16xf32> to vector<16x16xf32>
    %60 = arith.subf %47, %59 : vector<16x16xf32>
    %cst_26 = arith.constant 9.99999974E-6 : f32
    %61 = vector.broadcast %cst_26 : f32 to vector<1x16xf32>
    %62 = arith.addf %58, %61 : vector<1x16xf32>
    %63 = math.rsqrt %62 : vector<1x16xf32>
    %64 = vector.broadcast %63 : vector<1x16xf32> to vector<16x16xf32>
    %65 = arith.mulf %60, %64 : vector<16x16xf32>
    %66 = vector.extract_strided_slice %15 {offsets = [0, 0], sizes = [1, 16], strides = [1, 1]} : vector<1x32xf32> to vector<1x16xf32>
    %67 = vector.broadcast %66 : vector<1x16xf32> to vector<16x16xf32>
    %68 = arith.mulf %65, %67 : vector<16x16xf32>
    %69 = vector.extract_strided_slice %16 {offsets = [0, 0], sizes = [1, 16], strides = [1, 1]} : vector<1x32xf32> to vector<1x16xf32>
    %70 = vector.broadcast %69 : vector<1x16xf32> to vector<16x16xf32>
    %71 = arith.addf %68, %70 : vector<16x16xf32>
    %cst_27 = arith.constant 0.000000e+00 : f32
    %72 = vector.broadcast %cst_27 : f32 to vector<16x16xf32>
    %73 = arith.maximumf %71, %72 : vector<16x16xf32>
    %c0_28 = arith.constant 0 : index
    %c0_29 = arith.constant 0 : index
    %74 = vector.load %arg21[%c0_28, %c0_29] : memref<16x32xf32, #tpu.memory_space<vmem>>, vector<16x16xf32>
    tpu.vector_store %arg21[%c0_28, %c0_29], %73 {strides = array<i32>} : memref<16x32xf32, #tpu.memory_space<vmem>>, vector<16x16xf32>,
    %75 = vector.extract_strided_slice %12 {offsets = [0, 2], sizes = [16, 1], strides = [1, 1]} : vector<16x4xf32> to vector<16x1xf32>
    %76 = vector.shape_cast %75 : vector<16x1xf32> to vector<16xf32>
    %77 = vector.extract_strided_slice %12 {offsets = [0, 3], sizes = [16, 1], strides = [1, 1]} : vector<16x4xf32> to vector<16x1xf32>
    %78 = vector.shape_cast %77 : vector<16x1xf32> to vector<16xf32>
    %79 = vector.shape_cast %78 : vector<16xf32> to vector<16x1xf32>
    %80 = vector.shape_cast %76 : vector<16xf32> to vector<1x16xf32>
    %81 = vector.broadcast %79 : vector<16x1xf32> to vector<16x16xf32>
    %82 = vector.broadcast %80 : vector<1x16xf32> to vector<16x16xf32>
    %83 = arith.addf %81, %82 : vector<16x16xf32>
    %cst_30 = arith.constant 0.000000e+00 : f32
    %84 = vector.broadcast %cst_30 : f32 to vector<16x16xf32>
    %85 = arith.cmpf ogt, %83, %84 : vector<16x16xf32>
    %cst_31 = arith.constant 2.000000e-01 : f32
    %86 = vector.broadcast %cst_31 : f32 to vector<16x16xf32>
    %87 = arith.mulf %86, %83 : vector<16x16xf32>
    %88 = arith.select %85, %83, %87 : vector<16x16xi1>, vector<16x16xf32>
    %89 = arith.addf %88, %5 : vector<16x16xf32>
    %cst_32 = arith.constant dense<0xFF800000> : vector<16xf32>
    %90 = vector.multi_reduction <maximumf>, %89, %cst_32 [1] : vector<16x16xf32> to vector<16xf32>
    %91 = vector.shape_cast %90 : vector<16xf32> to vector<16x1xf32>
    %92 = vector.broadcast %91 : vector<16x1xf32> to vector<16x16xf32>
    %93 = arith.subf %89, %92 : vector<16x16xf32>
    %94 = math.exp %93 : vector<16x16xf32>
    %cst_33 = arith.constant dense<0.000000e+00> : vector<16xf32>
    %95 = vector.multi_reduction <add>, %94, %cst_33 [1] : vector<16x16xf32> to vector<16xf32>
    %96 = vector.shape_cast %95 : vector<16xf32> to vector<16x1xf32>
    %97 = arith.truncf %94 : vector<16x16xf32> to vector<16x16xbf16>
    %98 = vector.extract_strided_slice %13 {offsets = [0, 16], sizes = [16, 16], strides = [1, 1]} : vector<16x32xbf16> to vector<16x16xbf16>
    %cst_34 = arith.constant dense<0.000000e+00> : vector<16x16xf32>
    %99 = tpu.matmul %97, %98, %cst_34 {dimension_numbers = #tpu.dot_dimension_numbers<[1], [0], [0], [1], [0, 0, 1, 1], [], []>} : vector<16x16xbf16>, vector<16x16xbf16>, vector<16x16xf32> -> vector<16x16xf32>
    %100 = tpu.reciprocal %96 {approx = true} : vector<16x1xf32> -> vector<16x1xf32>
    %101 = vector.broadcast %100 : vector<16x1xf32> to vector<16x16xf32>
    %102 = arith.mulf %99, %101 : vector<16x16xf32>
    %103 = vector.extract_strided_slice %14 {offsets = [0, 16], sizes = [1, 16], strides = [1, 1]} : vector<1x32xf32> to vector<1x16xf32>
    %104 = vector.broadcast %103 : vector<1x16xf32> to vector<16x16xf32>
    %105 = arith.addf %102, %104 : vector<16x16xf32>
    %cst_35 = arith.constant dense<0.000000e+00> : vector<16xf32>
    %106 = vector.multi_reduction <add>, %105, %cst_35 [0] : vector<16x16xf32> to vector<16xf32>
    %107 = vector.shape_cast %106 : vector<16xf32> to vector<1x16xf32>
    %cst_36 = arith.constant 1.600000e+01 : f32
    %108 = vector.broadcast %cst_36 : f32 to vector<1x16xf32>
    %109 = arith.divf %107, %108 : vector<1x16xf32>
    %110 = arith.mulf %105, %105 : vector<16x16xf32>
    %cst_37 = arith.constant dense<0.000000e+00> : vector<16xf32>
    %111 = vector.multi_reduction <add>, %110, %cst_37 [0] : vector<16x16xf32> to vector<16xf32>
    %112 = vector.shape_cast %111 : vector<16xf32> to vector<1x16xf32>
    %cst_38 = arith.constant 1.600000e+01 : f32
    %113 = vector.broadcast %cst_38 : f32 to vector<1x16xf32>
    %114 = arith.divf %112, %113 : vector<1x16xf32>
    %115 = arith.mulf %109, %109 : vector<1x16xf32>
    %116 = arith.subf %114, %115 : vector<1x16xf32>
    %117 = vector.broadcast %109 : vector<1x16xf32> to vector<16x16xf32>
    %118 = arith.subf %105, %117 : vector<16x16xf32>
    %cst_39 = arith.constant 9.99999974E-6 : f32
    %119 = vector.broadcast %cst_39 : f32 to vector<1x16xf32>
    %120 = arith.addf %116, %119 : vector<1x16xf32>
    %121 = math.rsqrt %120 : vector<1x16xf32>
    %122 = vector.broadcast %121 : vector<1x16xf32> to vector<16x16xf32>
    %123 = arith.mulf %118, %122 : vector<16x16xf32>
    %124 = vector.extract_strided_slice %15 {offsets = [0, 16], sizes = [1, 16], strides = [1, 1]} : vector<1x32xf32> to vector<1x16xf32>
    %125 = vector.broadcast %124 : vector<1x16xf32> to vector<16x16xf32>
    %126 = arith.mulf %123, %125 : vector<16x16xf32>
    %127 = vector.extract_strided_slice %16 {offsets = [0, 16], sizes = [1, 16], strides = [1, 1]} : vector<1x32xf32> to vector<1x16xf32>
    %128 = vector.broadcast %127 : vector<1x16xf32> to vector<16x16xf32>
    %129 = arith.addf %126, %128 : vector<16x16xf32>
    %cst_40 = arith.constant 0.000000e+00 : f32
    %130 = vector.broadcast %cst_40 : f32 to vector<16x16xf32>
    %131 = arith.maximumf %129, %130 : vector<16x16xf32>
    %c0_41 = arith.constant 0 : index
    %c16 = arith.constant 16 : index
    %132 = vector.load %arg21[%c0_41, %c16] : memref<16x32xf32, #tpu.memory_space<vmem>>, vector<16x16xf32>
    tpu.vector_store %arg21[%c0_41, %c16], %131 {strides = array<i32>} : memref<16x32xf32, #tpu.memory_space<vmem>>, vector<16x16xf32>,
    %c0_42 = arith.constant 0 : index
    %c0_43 = arith.constant 0 : index
    %133 = vector.load %arg21[%c0_42, %c0_43] : memref<16x32xf32, #tpu.memory_space<vmem>>, vector<16x32xf32>
    %134 = arith.truncf %133 : vector<16x32xf32> to vector<16x32xbf16>
    %c0_44 = arith.constant 0 : index
    %c0_45 = arith.constant 0 : index
    %135 = vector.load %arg8[%c0_44, %c0_45] : memref<32x64xf32, #tpu.memory_space<vmem>>, vector<32x64xf32>
    %136 = arith.truncf %135 : vector<32x64xf32> to vector<32x64xbf16>
    %cst_46 = arith.constant dense<0.000000e+00> : vector<16x64xf32>
    %137 = tpu.matmul %134, %136, %cst_46 {dimension_numbers = #tpu.dot_dimension_numbers<[1], [0], [0], [1], [0, 0, 1, 1], [], []>} : vector<16x32xbf16>, vector<32x64xbf16>, vector<16x64xf32> -> vector<16x64xf32>
    %c0_47 = arith.constant 0 : index
    %c0_48 = arith.constant 0 : index
    %138 = vector.load %arg9[%c0_47, %c0_48] : memref<64x4xf32, #tpu.memory_space<vmem>>, vector<64x4xf32>
    %cst_49 = arith.constant dense<0.000000e+00> : vector<16x4xf32>
    %139 = tpu.matmul %137, %138, %cst_49 {dimension_numbers = #tpu.dot_dimension_numbers<[1], [0], [0], [1], [0, 0, 1, 1], [], []>} : vector<16x64xf32>, vector<64x4xf32>, vector<16x4xf32> -> vector<16x4xf32>
    %140 = arith.truncf %137 : vector<16x64xf32> to vector<16x64xbf16>
    %c0_50 = arith.constant 0 : index
    %c0_51 = arith.constant 0 : index
    %141 = vector.load %arg10[%c0_50, %c0_51] : memref<1x64xf32, #tpu.memory_space<vmem>>, vector<1x64xf32>
    %c0_52 = arith.constant 0 : index
    %c0_53 = arith.constant 0 : index
    %142 = vector.load %arg11[%c0_52, %c0_53] : memref<1x64xf32, #tpu.memory_space<vmem>>, vector<1x64xf32>
    %c0_54 = arith.constant 0 : index
    %c0_55 = arith.constant 0 : index
    %143 = vector.load %arg12[%c0_54, %c0_55] : memref<1x64xf32, #tpu.memory_space<vmem>>, vector<1x64xf32>
    %144 = vector.extract_strided_slice %139 {offsets = [0, 0], sizes = [16, 1], strides = [1, 1]} : vector<16x4xf32> to vector<16x1xf32>
    %145 = vector.shape_cast %144 : vector<16x1xf32> to vector<16xf32>
    %146 = vector.extract_strided_slice %139 {offsets = [0, 1], sizes = [16, 1], strides = [1, 1]} : vector<16x4xf32> to vector<16x1xf32>
    %147 = vector.shape_cast %146 : vector<16x1xf32> to vector<16xf32>
    %148 = vector.shape_cast %147 : vector<16xf32> to vector<16x1xf32>
    %149 = vector.shape_cast %145 : vector<16xf32> to vector<1x16xf32>
    %150 = vector.broadcast %148 : vector<16x1xf32> to vector<16x16xf32>
    %151 = vector.broadcast %149 : vector<1x16xf32> to vector<16x16xf32>
    %152 = arith.addf %150, %151 : vector<16x16xf32>
    %cst_56 = arith.constant 0.000000e+00 : f32
    %153 = vector.broadcast %cst_56 : f32 to vector<16x16xf32>
    %154 = arith.cmpf ogt, %152, %153 : vector<16x16xf32>
    %cst_57 = arith.constant 2.000000e-01 : f32
    %155 = vector.broadcast %cst_57 : f32 to vector<16x16xf32>
    %156 = arith.mulf %155, %152 : vector<16x16xf32>
    %157 = arith.select %154, %152, %156 : vector<16x16xi1>, vector<16x16xf32>
    %158 = arith.addf %157, %5 : vector<16x16xf32>
    %cst_58 = arith.constant dense<0xFF800000> : vector<16xf32>
    %159 = vector.multi_reduction <maximumf>, %158, %cst_58 [1] : vector<16x16xf32> to vector<16xf32>
    %160 = vector.shape_cast %159 : vector<16xf32> to vector<16x1xf32>
    %161 = vector.broadcast %160 : vector<16x1xf32> to vector<16x16xf32>
    %162 = arith.subf %158, %161 : vector<16x16xf32>
    %163 = math.exp %162 : vector<16x16xf32>
    %cst_59 = arith.constant dense<0.000000e+00> : vector<16xf32>
    %164 = vector.multi_reduction <add>, %163, %cst_59 [1] : vector<16x16xf32> to vector<16xf32>
    %165 = vector.shape_cast %164 : vector<16xf32> to vector<16x1xf32>
    %166 = arith.truncf %163 : vector<16x16xf32> to vector<16x16xbf16>
    %167 = vector.extract_strided_slice %140 {offsets = [0, 0], sizes = [16, 32], strides = [1, 1]} : vector<16x64xbf16> to vector<16x32xbf16>
    %cst_60 = arith.constant dense<0.000000e+00> : vector<16x32xf32>
    %168 = tpu.matmul %166, %167, %cst_60 {dimension_numbers = #tpu.dot_dimension_numbers<[1], [0], [0], [1], [0, 0, 1, 1], [], []>} : vector<16x16xbf16>, vector<16x32xbf16>, vector<16x32xf32> -> vector<16x32xf32>
    %169 = tpu.reciprocal %165 {approx = true} : vector<16x1xf32> -> vector<16x1xf32>
    %170 = vector.broadcast %169 : vector<16x1xf32> to vector<16x32xf32>
    %171 = arith.mulf %168, %170 : vector<16x32xf32>
    %172 = vector.extract_strided_slice %141 {offsets = [0, 0], sizes = [1, 32], strides = [1, 1]} : vector<1x64xf32> to vector<1x32xf32>
    %173 = vector.broadcast %172 : vector<1x32xf32> to vector<16x32xf32>
    %174 = arith.addf %171, %173 : vector<16x32xf32>
    %cst_61 = arith.constant dense<0.000000e+00> : vector<32xf32>
    %175 = vector.multi_reduction <add>, %174, %cst_61 [0] : vector<16x32xf32> to vector<32xf32>
    %176 = vector.shape_cast %175 : vector<32xf32> to vector<1x32xf32>
    %cst_62 = arith.constant 1.600000e+01 : f32
    %177 = vector.broadcast %cst_62 : f32 to vector<1x32xf32>
    %178 = arith.divf %176, %177 : vector<1x32xf32>
    %179 = arith.mulf %174, %174 : vector<16x32xf32>
    %cst_63 = arith.constant dense<0.000000e+00> : vector<32xf32>
    %180 = vector.multi_reduction <add>, %179, %cst_63 [0] : vector<16x32xf32> to vector<32xf32>
    %181 = vector.shape_cast %180 : vector<32xf32> to vector<1x32xf32>
    %cst_64 = arith.constant 1.600000e+01 : f32
    %182 = vector.broadcast %cst_64 : f32 to vector<1x32xf32>
    %183 = arith.divf %181, %182 : vector<1x32xf32>
    %184 = arith.mulf %178, %178 : vector<1x32xf32>
    %185 = arith.subf %183, %184 : vector<1x32xf32>
    %186 = vector.broadcast %178 : vector<1x32xf32> to vector<16x32xf32>
    %187 = arith.subf %174, %186 : vector<16x32xf32>
    %cst_65 = arith.constant 9.99999974E-6 : f32
    %188 = vector.broadcast %cst_65 : f32 to vector<1x32xf32>
    %189 = arith.addf %185, %188 : vector<1x32xf32>
    %190 = math.rsqrt %189 : vector<1x32xf32>
    %191 = vector.broadcast %190 : vector<1x32xf32> to vector<16x32xf32>
    %192 = arith.mulf %187, %191 : vector<16x32xf32>
    %193 = vector.extract_strided_slice %142 {offsets = [0, 0], sizes = [1, 32], strides = [1, 1]} : vector<1x64xf32> to vector<1x32xf32>
    %194 = vector.broadcast %193 : vector<1x32xf32> to vector<16x32xf32>
    %195 = arith.mulf %192, %194 : vector<16x32xf32>
    %196 = vector.extract_strided_slice %143 {offsets = [0, 0], sizes = [1, 32], strides = [1, 1]} : vector<1x64xf32> to vector<1x32xf32>
    %197 = vector.broadcast %196 : vector<1x32xf32> to vector<16x32xf32>
    %198 = arith.addf %195, %197 : vector<16x32xf32>
    %cst_66 = arith.constant 0.000000e+00 : f32
    %199 = vector.broadcast %cst_66 : f32 to vector<16x32xf32>
    %200 = arith.maximumf %198, %199 : vector<16x32xf32>
    %c0_67 = arith.constant 0 : index
    %c0_68 = arith.constant 0 : index
    %201 = vector.load %arg22[%c0_67, %c0_68] : memref<16x64xf32, #tpu.memory_space<vmem>>, vector<16x32xf32>
    tpu.vector_store %arg22[%c0_67, %c0_68], %200 {strides = array<i32>} : memref<16x64xf32, #tpu.memory_space<vmem>>, vector<16x32xf32>,
    %202 = vector.extract_strided_slice %139 {offsets = [0, 2], sizes = [16, 1], strides = [1, 1]} : vector<16x4xf32> to vector<16x1xf32>
    %203 = vector.shape_cast %202 : vector<16x1xf32> to vector<16xf32>
    %204 = vector.extract_strided_slice %139 {offsets = [0, 3], sizes = [16, 1], strides = [1, 1]} : vector<16x4xf32> to vector<16x1xf32>
    %205 = vector.shape_cast %204 : vector<16x1xf32> to vector<16xf32>
    %206 = vector.shape_cast %205 : vector<16xf32> to vector<16x1xf32>
    %207 = vector.shape_cast %203 : vector<16xf32> to vector<1x16xf32>
    %208 = vector.broadcast %206 : vector<16x1xf32> to vector<16x16xf32>
    %209 = vector.broadcast %207 : vector<1x16xf32> to vector<16x16xf32>
    %210 = arith.addf %208, %209 : vector<16x16xf32>
    %cst_69 = arith.constant 0.000000e+00 : f32
    %211 = vector.broadcast %cst_69 : f32 to vector<16x16xf32>
    %212 = arith.cmpf ogt, %210, %211 : vector<16x16xf32>
    %cst_70 = arith.constant 2.000000e-01 : f32
    %213 = vector.broadcast %cst_70 : f32 to vector<16x16xf32>
    %214 = arith.mulf %213, %210 : vector<16x16xf32>
    %215 = arith.select %212, %210, %214 : vector<16x16xi1>, vector<16x16xf32>
    %216 = arith.addf %215, %5 : vector<16x16xf32>
    %cst_71 = arith.constant dense<0xFF800000> : vector<16xf32>
    %217 = vector.multi_reduction <maximumf>, %216, %cst_71 [1] : vector<16x16xf32> to vector<16xf32>
    %218 = vector.shape_cast %217 : vector<16xf32> to vector<16x1xf32>
    %219 = vector.broadcast %218 : vector<16x1xf32> to vector<16x16xf32>
    %220 = arith.subf %216, %219 : vector<16x16xf32>
    %221 = math.exp %220 : vector<16x16xf32>
    %cst_72 = arith.constant dense<0.000000e+00> : vector<16xf32>
    %222 = vector.multi_reduction <add>, %221, %cst_72 [1] : vector<16x16xf32> to vector<16xf32>
    %223 = vector.shape_cast %222 : vector<16xf32> to vector<16x1xf32>
    %224 = arith.truncf %221 : vector<16x16xf32> to vector<16x16xbf16>
    %225 = vector.extract_strided_slice %140 {offsets = [0, 32], sizes = [16, 32], strides = [1, 1]} : vector<16x64xbf16> to vector<16x32xbf16>
    %cst_73 = arith.constant dense<0.000000e+00> : vector<16x32xf32>
    %226 = tpu.matmul %224, %225, %cst_73 {dimension_numbers = #tpu.dot_dimension_numbers<[1], [0], [0], [1], [0, 0, 1, 1], [], []>} : vector<16x16xbf16>, vector<16x32xbf16>, vector<16x32xf32> -> vector<16x32xf32>
    %227 = tpu.reciprocal %223 {approx = true} : vector<16x1xf32> -> vector<16x1xf32>
    %228 = vector.broadcast %227 : vector<16x1xf32> to vector<16x32xf32>
    %229 = arith.mulf %226, %228 : vector<16x32xf32>
    %230 = vector.extract_strided_slice %141 {offsets = [0, 32], sizes = [1, 32], strides = [1, 1]} : vector<1x64xf32> to vector<1x32xf32>
    %231 = vector.broadcast %230 : vector<1x32xf32> to vector<16x32xf32>
    %232 = arith.addf %229, %231 : vector<16x32xf32>
    %cst_74 = arith.constant dense<0.000000e+00> : vector<32xf32>
    %233 = vector.multi_reduction <add>, %232, %cst_74 [0] : vector<16x32xf32> to vector<32xf32>
    %234 = vector.shape_cast %233 : vector<32xf32> to vector<1x32xf32>
    %cst_75 = arith.constant 1.600000e+01 : f32
    %235 = vector.broadcast %cst_75 : f32 to vector<1x32xf32>
    %236 = arith.divf %234, %235 : vector<1x32xf32>
    %237 = arith.mulf %232, %232 : vector<16x32xf32>
    %cst_76 = arith.constant dense<0.000000e+00> : vector<32xf32>
    %238 = vector.multi_reduction <add>, %237, %cst_76 [0] : vector<16x32xf32> to vector<32xf32>
    %239 = vector.shape_cast %238 : vector<32xf32> to vector<1x32xf32>
    %cst_77 = arith.constant 1.600000e+01 : f32
    %240 = vector.broadcast %cst_77 : f32 to vector<1x32xf32>
    %241 = arith.divf %239, %240 : vector<1x32xf32>
    %242 = arith.mulf %236, %236 : vector<1x32xf32>
    %243 = arith.subf %241, %242 : vector<1x32xf32>
    %244 = vector.broadcast %236 : vector<1x32xf32> to vector<16x32xf32>
    %245 = arith.subf %232, %244 : vector<16x32xf32>
    %cst_78 = arith.constant 9.99999974E-6 : f32
    %246 = vector.broadcast %cst_78 : f32 to vector<1x32xf32>
    %247 = arith.addf %243, %246 : vector<1x32xf32>
    %248 = math.rsqrt %247 : vector<1x32xf32>
    %249 = vector.broadcast %248 : vector<1x32xf32> to vector<16x32xf32>
    %250 = arith.mulf %245, %249 : vector<16x32xf32>
    %251 = vector.extract_strided_slice %142 {offsets = [0, 32], sizes = [1, 32], strides = [1, 1]} : vector<1x64xf32> to vector<1x32xf32>
    %252 = vector.broadcast %251 : vector<1x32xf32> to vector<16x32xf32>
    %253 = arith.mulf %250, %252 : vector<16x32xf32>
    %254 = vector.extract_strided_slice %143 {offsets = [0, 32], sizes = [1, 32], strides = [1, 1]} : vector<1x64xf32> to vector<1x32xf32>
    %255 = vector.broadcast %254 : vector<1x32xf32> to vector<16x32xf32>
    %256 = arith.addf %253, %255 : vector<16x32xf32>
    %cst_79 = arith.constant 0.000000e+00 : f32
    %257 = vector.broadcast %cst_79 : f32 to vector<16x32xf32>
    %258 = arith.maximumf %256, %257 : vector<16x32xf32>
    %c0_80 = arith.constant 0 : index
    %c32 = arith.constant 32 : index
    %259 = vector.load %arg22[%c0_80, %c32] : memref<16x64xf32, #tpu.memory_space<vmem>>, vector<16x32xf32>
    tpu.vector_store %arg22[%c0_80, %c32], %258 {strides = array<i32>} : memref<16x64xf32, #tpu.memory_space<vmem>>, vector<16x32xf32>,
    %c0_81 = arith.constant 0 : index
    %c0_82 = arith.constant 0 : index
    %260 = vector.load %arg22[%c0_81, %c0_82] : memref<16x64xf32, #tpu.memory_space<vmem>>, vector<16x64xf32>
    %261 = arith.truncf %260 : vector<16x64xf32> to vector<16x64xbf16>
    %c0_83 = arith.constant 0 : index
    %c0_84 = arith.constant 0 : index
    %262 = vector.load %arg13[%c0_83, %c0_84] : memref<64x128xf32, #tpu.memory_space<vmem>>, vector<64x128xf32>
    %263 = arith.truncf %262 : vector<64x128xf32> to vector<64x128xbf16>
    %cst_85 = arith.constant dense<0.000000e+00> : vector<16x128xf32>
    %264 = tpu.matmul %261, %263, %cst_85 {dimension_numbers = #tpu.dot_dimension_numbers<[1], [0], [0], [1], [0, 0, 1, 1], [], []>} : vector<16x64xbf16>, vector<64x128xbf16>, vector<16x128xf32> -> vector<16x128xf32>
    %c0_86 = arith.constant 0 : index
    %c0_87 = arith.constant 0 : index
    %265 = vector.load %arg14[%c0_86, %c0_87] : memref<128x4xf32, #tpu.memory_space<vmem>>, vector<128x4xf32>
    %cst_88 = arith.constant dense<0.000000e+00> : vector<16x4xf32>
    %266 = tpu.matmul %264, %265, %cst_88 {dimension_numbers = #tpu.dot_dimension_numbers<[1], [0], [0], [1], [0, 0, 1, 1], [], []>} : vector<16x128xf32>, vector<128x4xf32>, vector<16x4xf32> -> vector<16x4xf32>
    %267 = arith.truncf %264 : vector<16x128xf32> to vector<16x128xbf16>
    %c0_89 = arith.constant 0 : index
    %c0_90 = arith.constant 0 : index
    %268 = vector.load %arg15[%c0_89, %c0_90] : memref<1x128xf32, #tpu.memory_space<vmem>>, vector<1x128xf32>
    %c0_91 = arith.constant 0 : index
    %c0_92 = arith.constant 0 : index
    %269 = vector.load %arg16[%c0_91, %c0_92] : memref<1x128xf32, #tpu.memory_space<vmem>>, vector<1x128xf32>
    %c0_93 = arith.constant 0 : index
    %c0_94 = arith.constant 0 : index
    %270 = vector.load %arg17[%c0_93, %c0_94] : memref<1x128xf32, #tpu.memory_space<vmem>>, vector<1x128xf32>
    %271 = vector.extract_strided_slice %266 {offsets = [0, 0], sizes = [16, 1], strides = [1, 1]} : vector<16x4xf32> to vector<16x1xf32>
    %272 = vector.shape_cast %271 : vector<16x1xf32> to vector<16xf32>
    %273 = vector.extract_strided_slice %266 {offsets = [0, 1], sizes = [16, 1], strides = [1, 1]} : vector<16x4xf32> to vector<16x1xf32>
    %274 = vector.shape_cast %273 : vector<16x1xf32> to vector<16xf32>
    %275 = vector.shape_cast %274 : vector<16xf32> to vector<16x1xf32>
    %276 = vector.shape_cast %272 : vector<16xf32> to vector<1x16xf32>
    %277 = vector.broadcast %275 : vector<16x1xf32> to vector<16x16xf32>
    %278 = vector.broadcast %276 : vector<1x16xf32> to vector<16x16xf32>
    %279 = arith.addf %277, %278 : vector<16x16xf32>
    %cst_95 = arith.constant 0.000000e+00 : f32
    %280 = vector.broadcast %cst_95 : f32 to vector<16x16xf32>
    %281 = arith.cmpf ogt, %279, %280 : vector<16x16xf32>
    %cst_96 = arith.constant 2.000000e-01 : f32
    %282 = vector.broadcast %cst_96 : f32 to vector<16x16xf32>
    %283 = arith.mulf %282, %279 : vector<16x16xf32>
    %284 = arith.select %281, %279, %283 : vector<16x16xi1>, vector<16x16xf32>
    %285 = arith.addf %284, %5 : vector<16x16xf32>
    %cst_97 = arith.constant dense<0xFF800000> : vector<16xf32>
    %286 = vector.multi_reduction <maximumf>, %285, %cst_97 [1] : vector<16x16xf32> to vector<16xf32>
    %287 = vector.shape_cast %286 : vector<16xf32> to vector<16x1xf32>
    %288 = vector.broadcast %287 : vector<16x1xf32> to vector<16x16xf32>
    %289 = arith.subf %285, %288 : vector<16x16xf32>
    %290 = math.exp %289 : vector<16x16xf32>
    %cst_98 = arith.constant dense<0.000000e+00> : vector<16xf32>
    %291 = vector.multi_reduction <add>, %290, %cst_98 [1] : vector<16x16xf32> to vector<16xf32>
    %292 = vector.shape_cast %291 : vector<16xf32> to vector<16x1xf32>
    %293 = arith.truncf %290 : vector<16x16xf32> to vector<16x16xbf16>
    %294 = vector.extract_strided_slice %267 {offsets = [0, 0], sizes = [16, 64], strides = [1, 1]} : vector<16x128xbf16> to vector<16x64xbf16>
    %cst_99 = arith.constant dense<0.000000e+00> : vector<16x64xf32>
    %295 = tpu.matmul %293, %294, %cst_99 {dimension_numbers = #tpu.dot_dimension_numbers<[1], [0], [0], [1], [0, 0, 1, 1], [], []>} : vector<16x16xbf16>, vector<16x64xbf16>, vector<16x64xf32> -> vector<16x64xf32>
    %296 = tpu.reciprocal %292 {approx = true} : vector<16x1xf32> -> vector<16x1xf32>
    %297 = vector.broadcast %296 : vector<16x1xf32> to vector<16x64xf32>
    %298 = arith.mulf %295, %297 : vector<16x64xf32>
    %299 = vector.extract_strided_slice %268 {offsets = [0, 0], sizes = [1, 64], strides = [1, 1]} : vector<1x128xf32> to vector<1x64xf32>
    %300 = vector.broadcast %299 : vector<1x64xf32> to vector<16x64xf32>
    %301 = arith.addf %298, %300 : vector<16x64xf32>
    %cst_100 = arith.constant dense<0.000000e+00> : vector<64xf32>
    %302 = vector.multi_reduction <add>, %301, %cst_100 [0] : vector<16x64xf32> to vector<64xf32>
    %303 = vector.shape_cast %302 : vector<64xf32> to vector<1x64xf32>
    %cst_101 = arith.constant 1.600000e+01 : f32
    %304 = vector.broadcast %cst_101 : f32 to vector<1x64xf32>
    %305 = arith.divf %303, %304 : vector<1x64xf32>
    %306 = arith.mulf %301, %301 : vector<16x64xf32>
    %cst_102 = arith.constant dense<0.000000e+00> : vector<64xf32>
    %307 = vector.multi_reduction <add>, %306, %cst_102 [0] : vector<16x64xf32> to vector<64xf32>
    %308 = vector.shape_cast %307 : vector<64xf32> to vector<1x64xf32>
    %cst_103 = arith.constant 1.600000e+01 : f32
    %309 = vector.broadcast %cst_103 : f32 to vector<1x64xf32>
    %310 = arith.divf %308, %309 : vector<1x64xf32>
    %311 = arith.mulf %305, %305 : vector<1x64xf32>
    %312 = arith.subf %310, %311 : vector<1x64xf32>
    %313 = vector.broadcast %305 : vector<1x64xf32> to vector<16x64xf32>
    %314 = arith.subf %301, %313 : vector<16x64xf32>
    %cst_104 = arith.constant 9.99999974E-6 : f32
    %315 = vector.broadcast %cst_104 : f32 to vector<1x64xf32>
    %316 = arith.addf %312, %315 : vector<1x64xf32>
    %317 = math.rsqrt %316 : vector<1x64xf32>
    %318 = vector.broadcast %317 : vector<1x64xf32> to vector<16x64xf32>
    %319 = arith.mulf %314, %318 : vector<16x64xf32>
    %320 = vector.extract_strided_slice %269 {offsets = [0, 0], sizes = [1, 64], strides = [1, 1]} : vector<1x128xf32> to vector<1x64xf32>
    %321 = vector.broadcast %320 : vector<1x64xf32> to vector<16x64xf32>
    %322 = arith.mulf %319, %321 : vector<16x64xf32>
    %323 = vector.extract_strided_slice %270 {offsets = [0, 0], sizes = [1, 64], strides = [1, 1]} : vector<1x128xf32> to vector<1x64xf32>
    %324 = vector.broadcast %323 : vector<1x64xf32> to vector<16x64xf32>
    %325 = arith.addf %322, %324 : vector<16x64xf32>
    %cst_105 = arith.constant 0.000000e+00 : f32
    %326 = vector.broadcast %cst_105 : f32 to vector<16x64xf32>
    %327 = arith.maximumf %325, %326 : vector<16x64xf32>
    %c0_106 = arith.constant 0 : index
    %c0_107 = arith.constant 0 : index
    %328 = vector.load %arg23[%c0_106, %c0_107] : memref<16x128xf32, #tpu.memory_space<vmem>>, vector<16x64xf32>
    tpu.vector_store %arg23[%c0_106, %c0_107], %327 {strides = array<i32>} : memref<16x128xf32, #tpu.memory_space<vmem>>, vector<16x64xf32>,
    %329 = vector.extract_strided_slice %266 {offsets = [0, 2], sizes = [16, 1], strides = [1, 1]} : vector<16x4xf32> to vector<16x1xf32>
    %330 = vector.shape_cast %329 : vector<16x1xf32> to vector<16xf32>
    %331 = vector.extract_strided_slice %266 {offsets = [0, 3], sizes = [16, 1], strides = [1, 1]} : vector<16x4xf32> to vector<16x1xf32>
    %332 = vector.shape_cast %331 : vector<16x1xf32> to vector<16xf32>
    %333 = vector.shape_cast %332 : vector<16xf32> to vector<16x1xf32>
    %334 = vector.shape_cast %330 : vector<16xf32> to vector<1x16xf32>
    %335 = vector.broadcast %333 : vector<16x1xf32> to vector<16x16xf32>
    %336 = vector.broadcast %334 : vector<1x16xf32> to vector<16x16xf32>
    %337 = arith.addf %335, %336 : vector<16x16xf32>
    %cst_108 = arith.constant 0.000000e+00 : f32
    %338 = vector.broadcast %cst_108 : f32 to vector<16x16xf32>
    %339 = arith.cmpf ogt, %337, %338 : vector<16x16xf32>
    %cst_109 = arith.constant 2.000000e-01 : f32
    %340 = vector.broadcast %cst_109 : f32 to vector<16x16xf32>
    %341 = arith.mulf %340, %337 : vector<16x16xf32>
    %342 = arith.select %339, %337, %341 : vector<16x16xi1>, vector<16x16xf32>
    %343 = arith.addf %342, %5 : vector<16x16xf32>
    %cst_110 = arith.constant dense<0xFF800000> : vector<16xf32>
    %344 = vector.multi_reduction <maximumf>, %343, %cst_110 [1] : vector<16x16xf32> to vector<16xf32>
    %345 = vector.shape_cast %344 : vector<16xf32> to vector<16x1xf32>
    %346 = vector.broadcast %345 : vector<16x1xf32> to vector<16x16xf32>
    %347 = arith.subf %343, %346 : vector<16x16xf32>
    %348 = math.exp %347 : vector<16x16xf32>
    %cst_111 = arith.constant dense<0.000000e+00> : vector<16xf32>
    %349 = vector.multi_reduction <add>, %348, %cst_111 [1] : vector<16x16xf32> to vector<16xf32>
    %350 = vector.shape_cast %349 : vector<16xf32> to vector<16x1xf32>
    %351 = arith.truncf %348 : vector<16x16xf32> to vector<16x16xbf16>
    %352 = vector.extract_strided_slice %267 {offsets = [0, 64], sizes = [16, 64], strides = [1, 1]} : vector<16x128xbf16> to vector<16x64xbf16>
    %cst_112 = arith.constant dense<0.000000e+00> : vector<16x64xf32>
    %353 = tpu.matmul %351, %352, %cst_112 {dimension_numbers = #tpu.dot_dimension_numbers<[1], [0], [0], [1], [0, 0, 1, 1], [], []>} : vector<16x16xbf16>, vector<16x64xbf16>, vector<16x64xf32> -> vector<16x64xf32>
    %354 = tpu.reciprocal %350 {approx = true} : vector<16x1xf32> -> vector<16x1xf32>
    %355 = vector.broadcast %354 : vector<16x1xf32> to vector<16x64xf32>
    %356 = arith.mulf %353, %355 : vector<16x64xf32>
    %357 = vector.extract_strided_slice %268 {offsets = [0, 64], sizes = [1, 64], strides = [1, 1]} : vector<1x128xf32> to vector<1x64xf32>
    %358 = vector.broadcast %357 : vector<1x64xf32> to vector<16x64xf32>
    %359 = arith.addf %356, %358 : vector<16x64xf32>
    %cst_113 = arith.constant dense<0.000000e+00> : vector<64xf32>
    %360 = vector.multi_reduction <add>, %359, %cst_113 [0] : vector<16x64xf32> to vector<64xf32>
    %361 = vector.shape_cast %360 : vector<64xf32> to vector<1x64xf32>
    %cst_114 = arith.constant 1.600000e+01 : f32
    %362 = vector.broadcast %cst_114 : f32 to vector<1x64xf32>
    %363 = arith.divf %361, %362 : vector<1x64xf32>
    %364 = arith.mulf %359, %359 : vector<16x64xf32>
    %cst_115 = arith.constant dense<0.000000e+00> : vector<64xf32>
    %365 = vector.multi_reduction <add>, %364, %cst_115 [0] : vector<16x64xf32> to vector<64xf32>
    %366 = vector.shape_cast %365 : vector<64xf32> to vector<1x64xf32>
    %cst_116 = arith.constant 1.600000e+01 : f32
    %367 = vector.broadcast %cst_116 : f32 to vector<1x64xf32>
    %368 = arith.divf %366, %367 : vector<1x64xf32>
    %369 = arith.mulf %363, %363 : vector<1x64xf32>
    %370 = arith.subf %368, %369 : vector<1x64xf32>
    %371 = vector.broadcast %363 : vector<1x64xf32> to vector<16x64xf32>
    %372 = arith.subf %359, %371 : vector<16x64xf32>
    %cst_117 = arith.constant 9.99999974E-6 : f32
    %373 = vector.broadcast %cst_117 : f32 to vector<1x64xf32>
    %374 = arith.addf %370, %373 : vector<1x64xf32>
    %375 = math.rsqrt %374 : vector<1x64xf32>
    %376 = vector.broadcast %375 : vector<1x64xf32> to vector<16x64xf32>
    %377 = arith.mulf %372, %376 : vector<16x64xf32>
    %378 = vector.extract_strided_slice %269 {offsets = [0, 64], sizes = [1, 64], strides = [1, 1]} : vector<1x128xf32> to vector<1x64xf32>
    %379 = vector.broadcast %378 : vector<1x64xf32> to vector<16x64xf32>
    %380 = arith.mulf %377, %379 : vector<16x64xf32>
    %381 = vector.extract_strided_slice %270 {offsets = [0, 64], sizes = [1, 64], strides = [1, 1]} : vector<1x128xf32> to vector<1x64xf32>
    %382 = vector.broadcast %381 : vector<1x64xf32> to vector<16x64xf32>
    %383 = arith.addf %380, %382 : vector<16x64xf32>
    %cst_118 = arith.constant 0.000000e+00 : f32
    %384 = vector.broadcast %cst_118 : f32 to vector<16x64xf32>
    %385 = arith.maximumf %383, %384 : vector<16x64xf32>
    %c0_119 = arith.constant 0 : index
    %c64 = arith.constant 64 : index
    %386 = vector.load %arg23[%c0_119, %c64] : memref<16x128xf32, #tpu.memory_space<vmem>>, vector<16x64xf32>
    tpu.vector_store %arg23[%c0_119, %c64], %385 {strides = array<i32>} : memref<16x128xf32, #tpu.memory_space<vmem>>, vector<16x64xf32>,
    %c0_120 = arith.constant 0 : index
    %c0_121 = arith.constant 0 : index
    %387 = vector.load %arg23[%c0_120, %c0_121] : memref<16x128xf32, #tpu.memory_space<vmem>>, vector<16x128xf32>
    %c0_122 = arith.constant 0 : index
    %c0_123 = arith.constant 0 : index
    %388 = vector.load %arg2[%c0_122, %c0_123] : memref<2x16xf32, #tpu.memory_space<vmem>>, vector<2x16xf32>
    %389 = vector.shape_cast %388 : vector<2x16xf32> to vector<2x16x1xf32>
    %cst_124 = arith.constant 0.000000e+00 : f32
    %390 = vector.broadcast %cst_124 : f32 to vector<2x16x1xf32>
    %391 = arith.cmpf ogt, %389, %390 : vector<2x16x1xf32>
    %392 = vector.shape_cast %387 : vector<16x128xf32> to vector<1x16x128xf32>
    %cst_125 = arith.constant -1.000000e+30 : f32
    %393 = vector.shape_cast %391 : vector<2x16x1xi1> to vector<2x16x1xi1>
    %394 = vector.broadcast %393 : vector<2x16x1xi1> to vector<2x16x128xi1>
    %395 = vector.shape_cast %392 : vector<1x16x128xf32> to vector<1x16x128xf32>
    %396 = vector.broadcast %395 : vector<1x16x128xf32> to vector<2x16x128xf32>
    %397 = vector.broadcast %cst_125 : f32 to vector<2x16x128xf32>
    %398 = arith.select %394, %396, %397 : vector<2x16x128xi1>, vector<2x16x128xf32>
    %cst_126 = arith.constant dense<0xFF800000> : vector<2x128xf32>
    %399 = vector.multi_reduction <maximumf>, %398, %cst_126 [1] : vector<2x16x128xf32> to vector<2x128xf32>
    %c0_127 = arith.constant 0 : index
    %c0_128 = arith.constant 0 : index
    %400 = vector.load %arg18[%c0_127, %c0_128] : memref<128x10xf32, #tpu.memory_space<vmem>>, vector<128x10xf32>
    %cst_129 = arith.constant dense<0.000000e+00> : vector<2x10xf32>
    %401 = tpu.matmul %399, %400, %cst_129 {dimension_numbers = #tpu.dot_dimension_numbers<[1], [0], [0], [1], [0, 0, 1, 1], [], []>} : vector<2x128xf32>, vector<128x10xf32>, vector<2x10xf32> -> vector<2x10xf32>
    %c0_130 = arith.constant 0 : index
    %c0_131 = arith.constant 0 : index
    %402 = vector.load %arg19[%c0_130, %c0_131] : memref<1x10xf32, #tpu.memory_space<vmem>>, vector<1x10xf32>
    %403 = vector.broadcast %402 : vector<1x10xf32> to vector<2x10xf32>
    %404 = arith.addf %401, %403 : vector<2x10xf32>
    %c0_132 = arith.constant 0 : index
    %c0_133 = arith.constant 0 : index
    %405 = vector.load %arg20[%c0_132, %c0_133] : memref<2x10xf32, #tpu.memory_space<vmem>>, vector<2x10xf32>
    tpu.vector_store %arg20[%c0_132, %c0_133], %404 {strides = array<i32>} : memref<2x10xf32, #tpu.memory_space<vmem>>, vector<2x10xf32>,
    return
  }
}

</mosaic_0001>

<llo_original>
// kernel: tpu_custom_call.1
$region0: #{tpu_custom_call.1}
  #allocation0 [shape = 'u32[]', space=smem, size = 0x4, offset = 0x4, fixed_abs, tag = 'smem constant byte address 0x4 - core index']
  #allocation1 [shape = 'u32[144,128]{1,0:T(1,128)}', space=vmem, size = 0x12000, scoped, tag = 'internal scratch']
  #allocation2 [shape = 'f32[16,32]{1,0:T(8,128)}', space=vmem, size = 0x2000, scoped, tag = 'scratch operand']
  #allocation3 [shape = 'f32[16,64]{1,0:T(8,128)}', space=vmem, size = 0x2000, scoped, tag = 'scratch operand']
  #allocation4 [shape = 'f32[16,128]{1,0:T(8,128)}', space=vmem, size = 0x2000, scoped, tag = 'scratch operand']
  %s0 = inlined_call_operand.vmem [shape: f32[16,8], index: 0, kind: input, shape index: {}]
  %s1 = inlined_call_operand.vmem [shape: f32[16,16], index: 1, kind: input, shape index: {}]
  %s2 = inlined_call_operand.vmem [shape: f32[2,16], index: 2, kind: input, shape index: {}]
  %s3 = inlined_call_operand.vmem [shape: f32[8,32], index: 3, kind: input, shape index: {}]
  %s4 = inlined_call_operand.vmem [shape: f32[32,4], index: 4, kind: input, shape index: {}]
  %s5 = inlined_call_operand.vmem [shape: f32[1,32], index: 5, kind: input, shape index: {}]
  %s6 = inlined_call_operand.vmem [shape: f32[1,32], index: 6, kind: input, shape index: {}]
  %s7 = inlined_call_operand.vmem [shape: f32[1,32], index: 7, kind: input, shape index: {}]
  %s8 = inlined_call_operand.vmem [shape: f32[32,64], index: 8, kind: input, shape index: {}]
  %s9 = inlined_call_operand.vmem [shape: f32[64,4], index: 9, kind: input, shape index: {}]
  %s10 = inlined_call_operand.vmem [shape: f32[1,64], index: 10, kind: input, shape index: {}]
  %s11 = inlined_call_operand.vmem [shape: f32[1,64], index: 11, kind: input, shape index: {}]
  %s12 = inlined_call_operand.vmem [shape: f32[1,64], index: 12, kind: input, shape index: {}]
  %s13 = inlined_call_operand.vmem [shape: f32[64,128], index: 13, kind: input, shape index: {}]
  %s14 = inlined_call_operand.vmem [shape: f32[128,4], index: 14, kind: input, shape index: {}]
  %s15 = inlined_call_operand.vmem [shape: f32[1,128], index: 15, kind: input, shape index: {}]
  %s16 = inlined_call_operand.vmem [shape: f32[1,128], index: 16, kind: input, shape index: {}]
  %s17 = inlined_call_operand.vmem [shape: f32[1,128], index: 17, kind: input, shape index: {}]
  %s18 = inlined_call_operand.vmem [shape: f32[128,10], index: 18, kind: input, shape index: {}]
  %s19 = inlined_call_operand.vmem [shape: f32[1,10], index: 19, kind: input, shape index: {}]
  %s20 = inlined_call_operand.hbm [shape: f32[2,10], index: 20, kind: output, shape index: {}]
  %s21 = sld [smem:[#allocation0]]
  $region90: #{tpu_custom_call.1} parent=0
    _
  %s23 = ssub.s32 1, %s21
  %s24 = scalar_select 0, %s23, %s21
  $region1: #{tpu_custom_call.1} parent=0
    #allocation5 [shape = 'u8[1024]{0}', space=vmem, size = 0x400, scoped, tag = 'output window, operand 0, single buffered']
    #allocation6 [shape = 's32[1]{0}', space=sflag, size = 0x4, scoped, tag = 'scoped memory for tpu_custom_call.1']
    %25 = vsyncpa [#allocation6], 0
    // Predicated region
    $region2: #{tpu_custom_call.1} parent=1 // pred_check
      _
    $region3: #{tpu_custom_call.1} parent=1 // pred_check_branch
      %27 = sbr.rel (0) target = $region5
    $region4: #{tpu_custom_call.1} parent=1 // pred_region
      _
    $region5: #{tpu_custom_call.1} parent=1 // pred_fallthru
      _
    // Predicated region
    $region6: #{tpu_custom_call.1} parent=1 // pred_check
      _
    $region7: #{tpu_custom_call.1} parent=1 // pred_check_branch
      %29 = sbr.rel (0) target = $region9
    $region8: #{tpu_custom_call.1} parent=1 // pred_region
      _
    $region9: #{tpu_custom_call.1} parent=1 // pred_fallthru
      _
    // Predicated region
    $region10: #{tpu_custom_call.1} parent=1 // pred_check
      _
    $region11: #{tpu_custom_call.1} parent=1 // pred_check_branch
      %31 = sbr.rel (0) target = $region13
    $region12: #{tpu_custom_call.1} parent=1 // pred_region
      _
    $region13: #{tpu_custom_call.1} parent=1 // pred_fallthru
      _
    // Predicated region
    $region14: #{tpu_custom_call.1} parent=1 // pred_check
      _
    $region15: #{tpu_custom_call.1} parent=1 // pred_check_branch
      %33 = sbr.rel (0) target = $region17
    $region16: #{tpu_custom_call.1} parent=1 // pred_region
      _
    $region17: #{tpu_custom_call.1} parent=1 // pred_fallthru
      _
    // Predicated region
    $region18: #{tpu_custom_call.1} parent=1 // pred_check
      _
    $region19: #{tpu_custom_call.1} parent=1 // pred_check_branch
      %35 = sbr.rel (0) target = $region21
    $region20: #{tpu_custom_call.1} parent=1 // pred_region
      _
    $region21: #{tpu_custom_call.1} parent=1 // pred_fallthru
      _
    // Predicated region
    $region22: #{tpu_custom_call.1} parent=1 // pred_check
      _
    $region23: #{tpu_custom_call.1} parent=1 // pred_check_branch
      %37 = sbr.rel (0) target = $region25
    $region24: #{tpu_custom_call.1} parent=1 // pred_region
      _
    $region25: #{tpu_custom_call.1} parent=1 // pred_fallthru
      _
    // Predicated region
    $region26: #{tpu_custom_call.1} parent=1 // pred_check
      _
    $region27: #{tpu_custom_call.1} parent=1 // pred_check_branch
      %39 = sbr.rel (0) target = $region29
    $region28: #{tpu_custom_call.1} parent=1 // pred_region
      _
    $region29: #{tpu_custom_call.1} parent=1 // pred_fallthru
      _
    // Predicated region
    $region30: #{tpu_custom_call.1} parent=1 // pred_check
      _
    $region31: #{tpu_custom_call.1} parent=1 // pred_check_branch
      %41 = sbr.rel (0) target = $region33
    $region32: #{tpu_custom_call.1} parent=1 // pred_region
      _
    $region33: #{tpu_custom_call.1} parent=1 // pred_fallthru
      _
    // Predicated region
    $region34: #{tpu_custom_call.1} parent=1 // pred_check
      _
    $region35: #{tpu_custom_call.1} parent=1 // pred_check_branch
      %43 = sbr.rel (0) target = $region37
    $region36: #{tpu_custom_call.1} parent=1 // pred_region
      _
    $region37: #{tpu_custom_call.1} parent=1 // pred_fallthru
      _
    // Predicated region
    $region38: #{tpu_custom_call.1} parent=1 // pred_check
      _
    $region39: #{tpu_custom_call.1} parent=1 // pred_check_branch
      %45 = sbr.rel (0) target = $region41
    $region40: #{tpu_custom_call.1} parent=1 // pred_region
      _
    $region41: #{tpu_custom_call.1} parent=1 // pred_fallthru
      _
    // Predicated region
    $region42: #{tpu_custom_call.1} parent=1 // pred_check
      _
    $region43: #{tpu_custom_call.1} parent=1 // pred_check_branch
      %47 = sbr.rel (0) target = $region45
    $region44: #{tpu_custom_call.1} parent=1 // pred_region
      _
    $region45: #{tpu_custom_call.1} parent=1 // pred_fallthru
      _
    // Predicated region
    $region46: #{tpu_custom_call.1} parent=1 // pred_check
      _
    $region47: #{tpu_custom_call.1} parent=1 // pred_check_branch
      %49 = sbr.rel (0) target = $region49
    $region48: #{tpu_custom_call.1} parent=1 // pred_region
      _
    $region49: #{tpu_custom_call.1} parent=1 // pred_fallthru
      _
    // Predicated region
    $region50: #{tpu_custom_call.1} parent=1 // pred_check
      _
    $region51: #{tpu_custom_call.1} parent=1 // pred_check_branch
      %51 = sbr.rel (0) target = $region53
    $region52: #{tpu_custom_call.1} parent=1 // pred_region
      _
    $region53: #{tpu_custom_call.1} parent=1 // pred_fallthru
      _
    // Predicated region
    $region54: #{tpu_custom_call.1} parent=1 // pred_check
      _
    $region55: #{tpu_custom_call.1} parent=1 // pred_check_branch
      %53 = sbr.rel (0) target = $region57
    $region56: #{tpu_custom_call.1} parent=1 // pred_region
      _
    $region57: #{tpu_custom_call.1} parent=1 // pred_fallthru
      _
    // Predicated region
    $region58: #{tpu_custom_call.1} parent=1 // pred_check
      _
    $region59: #{tpu_custom_call.1} parent=1 // pred_check_branch
      %55 = sbr.rel (0) target = $region61
    $region60: #{tpu_custom_call.1} parent=1 // pred_region
      _
    $region61: #{tpu_custom_call.1} parent=1 // pred_fallthru
      _
    // Predicated region
    $region62: #{tpu_custom_call.1} parent=1 // pred_check
      _
    $region63: #{tpu_custom_call.1} parent=1 // pred_check_branch
      %57 = sbr.rel (0) target = $region65
    $region64: #{tpu_custom_call.1} parent=1 // pred_region
      _
    $region65: #{tpu_custom_call.1} parent=1 // pred_fallthru
      _
    // Predicated region
    $region66: #{tpu_custom_call.1} parent=1 // pred_check
      _
    $region67: #{tpu_custom_call.1} parent=1 // pred_check_branch
      %59 = sbr.rel (0) target = $region69
    $region68: #{tpu_custom_call.1} parent=1 // pred_region
      _
    $region69: #{tpu_custom_call.1} parent=1 // pred_fallthru
      _
    // Predicated region
    $region70: #{tpu_custom_call.1} parent=1 // pred_check
      _
    $region71: #{tpu_custom_call.1} parent=1 // pred_check_branch
      %61 = sbr.rel (0) target = $region73
    $region72: #{tpu_custom_call.1} parent=1 // pred_region
      _
    $region73: #{tpu_custom_call.1} parent=1 // pred_fallthru
      _
    // Predicated region
    $region74: #{tpu_custom_call.1} parent=1 // pred_check
      _
    $region75: #{tpu_custom_call.1} parent=1 // pred_check_branch
      %63 = sbr.rel (0) target = $region77
    $region76: #{tpu_custom_call.1} parent=1 // pred_region
      _
    $region77: #{tpu_custom_call.1} parent=1 // pred_fallthru
      _
    // Predicated region
    $region78: #{tpu_custom_call.1} parent=1 // pred_check
      _
    $region79: #{tpu_custom_call.1} parent=1 // pred_check_branch
      %65 = sbr.rel (0) target = $region81
    $region80: #{tpu_custom_call.1} parent=1 // pred_region
      _
    $region81: #{tpu_custom_call.1} parent=1 // pred_fallthru
      _
    %v67 = vld [vmem:[%s1] sm:$0xff]
    %v68 = vld [vmem:[%s1 + $0x8] sm:$0xff]
    %vm69 = vcmp.gt.f32.partialorder %v67, 0.0
    %vm70 = vcmp.gt.f32.partialorder %v68, 0.0
    %v71 = vsel %vm69, 0.0, -1e+30
    %v72 = vsel %vm70, 0.0, -1e+30
    %v73 = vld [vmem:[%s0] sm:$0xff]
    %v74 = vld [vmem:[%s0 + $0x8] sm:$0xff]
    %v75 = vpack.c.bf16 %v74, %v73
    %v76 = vld [vmem:[%s3] sm:$0xff]
    %v77 = vpack.c.bf16 %v76, %v76
    %vm78 = vcmask 64512
    %v80 = vsel %vm78, %v75, 0
    %vm82 = vcmask 1043456
    %v84 = vsel %vm82, %v77, 0
    %86 = vmatprep.subr.bf16.mxu0 0
    %87 = vmatpush1.bf16.msra.mxu0 %v84
    %88 = vmatprep.subr.bf16.mxu0 0
    %89 = vmatpush1.bf16.msra.mxu0 0
    %90 = vmatprep.subr.bf16.mxu0 0
    %91 = vmatpush1.bf16.msra.mxu0 0
    %92 = vmatprep.subr.bf16.mxu0 0
    %93 = vmatpush1.bf16.msra.mxu0 0
    %94 = vmatprep.subr.bf16.mxu0 0
    %95 = vmatpush1.bf16.msra.mxu0 0
    %96 = vmatprep.subr.bf16.mxu0 0
    %97 = vmatpush1.bf16.msra.mxu0 0
    %98 = vmatprep.subr.bf16.mxu0 0
    %99 = vmatpush1.bf16.msra.mxu0 0
    %100 = vmatprep.subr.bf16.mxu0 0
    %101 = vmatpush1.bf16.msra.mxu0 0
    %102 = vmatprep.subr.bf16.mxu0 0
    %103 = vmatpush1.bf16.msra.mxu0 0
    %104 = vmatprep.subr.bf16.mxu0 0
    %105 = vmatpush1.bf16.msra.mxu0 0
    %106 = vmatprep.subr.bf16.mxu0 0
    %107 = vmatpush1.bf16.msra.mxu0 0
    %108 = vmatprep.subr.bf16.mxu0 0
    %109 = vmatpush1.bf16.msra.mxu0 0
    %110 = vmatprep.subr.bf16.mxu0 0
    %111 = vmatpush1.bf16.msra.mxu0 0
    %112 = vmatprep.subr.bf16.mxu0 0
    %113 = vmatpush1.bf16.msra.mxu0 0
    %114 = vmatprep.subr.bf16.mxu0 0
    %115 = vmatpush1.bf16.msra.mxu0 0
    %116 = vmatprep.subr.bf16.mxu0 0
    %117 = vmatpush1.bf16.msra.mxu0 0
    %118 = vmatprep.mubr.bf16.mxu0 0
    %119 = vmatmul.mubr.bf16.gmra.mrb[0].mxu0 %v80
    %v120 = vpop.f32.mrb[0].mxu0
    %v121 = vadd.f32 0.0, %v120
    %v122 = vpop.f32.mrb[0].mxu0
    %v123 = vpop.f32.mrb[0].mxu0
    %v124 = vadd.f32 0.0, %v123
    %v125 = vpop.f32.mrb[0].mxu0
    %126 = vdwg.mxu0
    %v127 = vld [vmem:[%s4] sm:$0xff]
    %v128 = vld [vmem:[%s4 + $0x8] sm:$0xff]
    %v129 = vld [vmem:[%s4 + $0x10] sm:$0xff]
    %v130 = vld [vmem:[%s4 + $0x18] sm:$0xff]
    %vm131 = vcmask 261120
    %v133 = vsel %vm131, %v121, 0
    %v136 = vsel %vm131, %v124, 0
    %138 = vmatprep.subr.mxu0 0.0
    %139 = vmatpush1.msra.mxu0 %v127
    %140 = vmatprep.subr.mxu0 0.0
    %141 = vmatpush1.msra.mxu0 %v128
    %142 = vmatprep.subr.mxu0 0.0
    %143 = vmatpush1.msra.mxu0 %v129
    %144 = vmatprep.subr.mxu0 0.0
    %145 = vmatpush1.msra.mxu0 %v130
    %146 = vmatprep.subr.mxu0 0.0
    %147 = vmatpush1.msra.mxu0 0.0
    %148 = vmatprep.subr.mxu0 0.0
    %149 = vmatpush1.msra.mxu0 0.0
    %150 = vmatprep.subr.mxu0 0.0
    %151 = vmatpush1.msra.mxu0 0.0
    %152 = vmatprep.subr.mxu0 0.0
    %153 = vmatpush1.msra.mxu0 0.0
    %154 = vmatprep.subr.mxu0 0.0
    %155 = vmatpush1.msra.mxu0 0.0
    %156 = vmatprep.subr.mxu0 0.0
    %157 = vmatpush1.msra.mxu0 0.0
    %158 = vmatprep.subr.mxu0 0.0
    %159 = vmatpush1.msra.mxu0 0.0
    %160 = vmatprep.subr.mxu0 0.0
    %161 = vmatpush1.msra.mxu0 0.0
    %162 = vmatprep.subr.mxu0 0.0
    %163 = vmatpush1.msra.mxu0 0.0
    %164 = vmatprep.subr.mxu0 0.0
    %165 = vmatpush1.msra.mxu0 0.0
    %166 = vmatprep.subr.mxu0 0.0
    %167 = vmatpush1.msra.mxu0 0.0
    %168 = vmatprep.subr.mxu0 0.0
    %169 = vmatpush1.msra.mxu0 0.0
    %170 = vmatprep.subr.mxu0 0.0
    %171 = vmatpush1.msra.mxu0 0.0
    %172 = vmatprep.subr.mxu0 0.0
    %173 = vmatpush1.msra.mxu0 0.0
    %174 = vmatprep.subr.mxu0 0.0
    %175 = vmatpush1.msra.mxu0 0.0
    %176 = vmatprep.subr.mxu0 0.0
    %177 = vmatpush1.msra.mxu0 0.0
    %178 = vmatprep.subr.mxu0 0.0
    %179 = vmatpush1.msra.mxu0 0.0
    %180 = vmatprep.subr.mxu0 0.0
    %181 = vmatpush1.msra.mxu0 0.0
    %182 = vmatprep.subr.mxu0 0.0
    %183 = vmatpush1.msra.mxu0 0.0
    %184 = vmatprep.subr.mxu0 0.0
    %185 = vmatpush1.msra.mxu0 0.0
    %186 = vmatprep.subr.mxu0 0.0
    %187 = vmatpush1.msra.mxu0 0.0
    %188 = vmatprep.subr.mxu0 0.0
    %189 = vmatpush1.msra.mxu0 0.0
    %190 = vmatprep.subr.mxu0 0.0
    %191 = vmatpush1.msra.mxu0 0.0
    %192 = vmatprep.subr.mxu0 0.0
    %193 = vmatpush1.msra.mxu0 0.0
    %194 = vmatprep.subr.mxu0 0.0
    %195 = vmatpush1.msra.mxu0 0.0
    %196 = vmatprep.subr.mxu0 0.0
    %197 = vmatpush1.msra.mxu0 0.0
    %198 = vmatprep.subr.mxu0 0.0
    %199 = vmatpush1.msra.mxu0 0.0
    %200 = vmatprep.subr.mxu0 0.0
    %201 = vmatpush1.msra.mxu0 0.0
    %202 = vmatprep.mubr.f32.mxu0 0.0
    %203 = vmatmul.mubr.f32.gmra.mrb[0].mxu0 %v133
    %v204 = vpop.f32.mrb[0].mxu0
    %v205 = vadd.f32 0.0, %v204
    %v206 = vpop.f32.mrb[0].mxu0
    %207 = vmatprep.mubr.f32.mxu0 0.0
    %208 = vmatmul.mubr.f32.gmra.mrb[0].mxu0 %v136
    %v209 = vpop.f32.mrb[0].mxu0
    %v210 = vadd.f32 0.0, %v209
    %v211 = vpop.f32.mrb[0].mxu0
    %212 = vdwg.mxu0
    %v213 = vpack.c.bf16 %v124, %v121
    %v214 = vld [vmem:[%s5] sm:$0x1]
    %v215 = vld [vmem:[%s6] sm:$0x1]
    %v216 = vld [vmem:[%s7] sm:$0x1]
    %218 = vset.pattern.permute.xlu0 1
    %219 = vperm.xlu0 %218, %v205
    %v220 = vpop.permute.xlu0 %219
    %223 = vset.pattern.permute.xlu0 1
    %224 = vperm.xlu0 %223, %v210
    %v225 = vpop.permute.xlu0 %224
    %227 = vset.pattern.permute.xlu0 0
    %228 = vperm.xlu0 %227, %v205
    %v229 = vpop.permute.xlu0 %228
    %230 = vset.pattern.permute.xlu0 0
    %231 = vperm.xlu0 %230, %v210
    %v232 = vpop.permute.xlu0 %231
    %v233 = vlaneseq
    %v234 = vand.u32 %v233, 127
    %v235 = vlaneseq
    %v236 = vshrl.u32 %v235, 7
    %v237 = vsub.s32 %v234, %v236
    %v238 = vrot.slane %v229, %v237
    %v239 = vadd.s32 %v234, 4294967288
    %v240 = vlaneseq
    %v241 = vshrl.u32 %v240, 7
    %v242 = vsub.s32 %v239, %v241
    %v243 = vrot.slane %v232, %v242
    %vm244 = vcmask 130112
    %v245 = vsel %vm244, %v243, %v238
    %vm246 = vcmask 1041409
    %vm247 = vcmask 1042434
    %v248 = vsel %vm247, %v245, %v245
    %vm249 = vcmask 1043459
    %v250 = vsel %vm249, %v245, %v248
    %vm251 = vcmask 1044484
    %v252 = vsel %vm251, %v245, %v250
    %vm253 = vcmask 1045509
    %v254 = vsel %vm253, %v245, %v252
    %vm255 = vcmask 1046534
    %v256 = vsel %vm255, %v245, %v254
    %vm257 = vcmask 1047559
    %v258 = vsel %vm257, %v245, %v256
    %v260 = vadd.f32 %v220, %v258
    %v261 = vadd.f32 %v225, %v258
    %vm262 = vcmp.gt.f32.partialorder %v260, 0.0
    %vm263 = vcmp.gt.f32.partialorder %v261, 0.0
    %v264 = vmul.f32 %v260, 0.2
    %v265 = vmul.f32 %v261, 0.2
    %v266 = vsel %vm262, %v260, %v264
    %v267 = vsel %vm263, %v261, %v265
    %v268 = vadd.f32 %v266, %v71
    %v269 = vadd.f32 %v267, %v72
    %vm270 = vcmask 130048
    %v271 = vsel %vm270, %v268, -inf
    %272 = vmax.xlane.f32.xlu0 %v271
    %v273 = vpop.xlane.xlu0 %272
    %v274 = vsel %vm270, %v269, -inf
    %275 = vmax.xlane.f32.xlu0 %v274
    %v276 = vpop.xlane.xlu0 %275
    %v277 = vsub.f32 %v268, %v273
    %v278 = vsub.f32 %v269, %v276
    %v279 = vmul.f32 %v277, 1.442695
    %v280 = vpow.pop %v279
    %v281 = vmul.f32 %v278, 1.442695
    %v282 = vpow.pop %v281
    %v283 = vsel %vm270, %v280, 0.0
    %284 = vadd.xlane.f32.xlu0 %v283
    %v285 = vpop.xlane.xlu0 %284
    %v286 = vsel %vm270, %v282, 0.0
    %287 = vadd.xlane.f32.xlu0 %v286
    %v288 = vpop.xlane.xlu0 %287
    %v289 = vpack.c.bf16 %v282, %v280
    %v291 = vsel %vm270, %v289, 0
    %293 = vmatprep.subr.bf16.mxu0 0
    %294 = vmatpush1.bf16.msra.mxu0 %v213
    %295 = vmatprep.subr.bf16.mxu0 0
    %296 = vmatpush1.bf16.msra.mxu0 0
    %297 = vmatprep.subr.bf16.mxu0 0
    %298 = vmatpush1.bf16.msra.mxu0 0
    %299 = vmatprep.subr.bf16.mxu0 0
    %300 = vmatpush1.bf16.msra.mxu0 0
    %301 = vmatprep.subr.bf16.mxu0 0
    %302 = vmatpush1.bf16.msra.mxu0 0
    %303 = vmatprep.subr.bf16.mxu0 0
    %304 = vmatpush1.bf16.msra.mxu0 0
    %305 = vmatprep.subr.bf16.mxu0 0
    %306 = vmatpush1.bf16.msra.mxu0 0
    %307 = vmatprep.subr.bf16.mxu0 0
    %308 = vmatpush1.bf16.msra.mxu0 0
    %309 = vmatprep.subr.bf16.mxu0 0
    %310 = vmatpush1.bf16.msra.mxu0 0
    %311 = vmatprep.subr.bf16.mxu0 0
    %312 = vmatpush1.bf16.msra.mxu0 0
    %313 = vmatprep.subr.bf16.mxu0 0
    %314 = vmatpush1.bf16.msra.mxu0 0
    %315 = vmatprep.subr.bf16.mxu0 0
    %316 = vmatpush1.bf16.msra.mxu0 0
    %317 = vmatprep.subr.bf16.mxu0 0
    %318 = vmatpush1.bf16.msra.mxu0 0
    %319 = vmatprep.subr.bf16.mxu0 0
    %320 = vmatpush1.bf16.msra.mxu0 0
    %321 = vmatprep.subr.bf16.mxu0 0
    %322 = vmatpush1.bf16.msra.mxu0 0
    %323 = vmatprep.subr.bf16.mxu0 0
    %324 = vmatpush1.bf16.msra.mxu0 0
    %325 = vmatprep.mubr.bf16.mxu0 0
    %326 = vmatmul.mubr.bf16.gmra.mrb[0].mxu0 %v291
    %v327 = vpop.f32.mrb[0].mxu0
    %v328 = vadd.f32 0.0, %v327
    %v329 = vpop.f32.mrb[0].mxu0
    %v330 = vpop.f32.mrb[0].mxu0
    %v331 = vadd.f32 0.0, %v330
    %v332 = vpop.f32.mrb[0].mxu0
    %333 = vdwg.mxu0
    %v334 = vrcp.pop %v285
    %v335 = vrcp.pop %v288
    %v336 = vmul.f32 %v328, %v334
    %v337 = vmul.f32 %v331, %v335
    %v339 = vlaneseq
    %v340 = vshrl.u32 %v339, 7
    %v341 = vsub.s32 0, %v340
    %v342 = vrot.slane %v214, %v341
    %v344 = vadd.f32 %v336, %v342
    %v345 = vadd.f32 %v337, %v342
    %v346 = vsel %vm270, %v344, 0.0
    %v347 = vsel %vm270, %v345, 0.0
    %v348 = vadd.f32 %v346, %v347
    %v349 = vrot.slane %v348, 4
    %v350 = vadd.f32 %v348, %v349
    %v351 = vrot.slane %v350, 2
    %v352 = vadd.f32 %v350, %v351
    %v353 = vrot.slane %v352, 1
    %v354 = vadd.f32 %v352, %v353
    %v355 = vrcp.pop 16.0
    %v356 = vmul.f32 %v354, %v355
    %v357 = vmul.f32 %v344, %v344
    %v358 = vmul.f32 %v345, %v345
    %v359 = vsel %vm270, %v357, 0.0
    %v360 = vsel %vm270, %v358, 0.0
    %v361 = vadd.f32 %v359, %v360
    %v362 = vrot.slane %v361, 4
    %v363 = vadd.f32 %v361, %v362
    %v364 = vrot.slane %v363, 2
    %v365 = vadd.f32 %v363, %v364
    %v366 = vrot.slane %v365, 1
    %v367 = vadd.f32 %v365, %v366
    %v368 = vmul.f32 %v367, %v355
    %v369 = vmul.f32 %v356, %v356
    %v370 = vsub.f32 %v368, %v369
    %v371 = vsub.f32 %v344, %v356
    %v372 = vsub.f32 %v345, %v356
    %v373 = vadd.f32 %v370, 1e-05
    %v374 = vrsqrt.pop %v373
    %v375 = vmul.f32 %v371, %v374
    %v376 = vmul.f32 %v372, %v374
    %v378 = vlaneseq
    %v379 = vshrl.u32 %v378, 7
    %v380 = vsub.s32 0, %v379
    %v381 = vrot.slane %v215, %v380
    %v383 = vmul.f32 %v375, %v381
    %v384 = vmul.f32 %v376, %v381
    %v386 = vlaneseq
    %v387 = vshrl.u32 %v386, 7
    %v388 = vsub.s32 0, %v387
    %v389 = vrot.slane %v216, %v388
    %v391 = vadd.f32 %v383, %v389
    %v392 = vadd.f32 %v384, %v389
    %v393 = vmax.f32 %v391, 0.0
    %v394 = vmax.f32 %v392, 0.0
    %395 = vst.msk [vmem:[#allocation2] sm:$0xff] %vm270, %v393
    %396 = vst.msk [vmem:[#allocation2 + $0x8] sm:$0xff] %vm270, %v394
    %397 = vset.pattern.permute.xlu0 3
    %398 = vperm.xlu0 %397, %v205
    %v399 = vpop.permute.xlu0 %398
    %401 = vset.pattern.permute.xlu0 3
    %402 = vperm.xlu0 %401, %v210
    %v403 = vpop.permute.xlu0 %402
    %405 = vset.pattern.permute.xlu0 2
    %406 = vperm.xlu0 %405, %v205
    %v407 = vpop.permute.xlu0 %406
    %408 = vset.pattern.permute.xlu0 2
    %409 = vperm.xlu0 %408, %v210
    %v410 = vpop.permute.xlu0 %409
    %v411 = vlaneseq
    %v412 = vshrl.u32 %v411, 7
    %v413 = vsub.s32 %v234, %v412
    %v414 = vrot.slane %v407, %v413
    %v415 = vlaneseq
    %v416 = vshrl.u32 %v415, 7
    %v417 = vsub.s32 %v239, %v416
    %v418 = vrot.slane %v410, %v417
    %v419 = vsel %vm244, %v418, %v414
    %v420 = vsel %vm247, %v419, %v419
    %v421 = vsel %vm249, %v419, %v420
    %v422 = vsel %vm251, %v419, %v421
    %v423 = vsel %vm253, %v419, %v422
    %v424 = vsel %vm255, %v419, %v423
    %v425 = vsel %vm257, %v419, %v424
    %v427 = vadd.f32 %v399, %v425
    %v428 = vadd.f32 %v403, %v425
    %vm429 = vcmp.gt.f32.partialorder %v427, 0.0
    %vm430 = vcmp.gt.f32.partialorder %v428, 0.0
    %v431 = vmul.f32 %v427, 0.2
    %v432 = vmul.f32 %v428, 0.2
    %v433 = vsel %vm429, %v427, %v431
    %v434 = vsel %vm430, %v428, %v432
    %v435 = vadd.f32 %v433, %v71
    %v436 = vadd.f32 %v434, %v72
    %v437 = vsel %vm270, %v435, -inf
    %438 = vmax.xlane.f32.xlu0 %v437
    %v439 = vpop.xlane.xlu0 %438
    %v440 = vsel %vm270, %v436, -inf
    %441 = vmax.xlane.f32.xlu0 %v440
    %v442 = vpop.xlane.xlu0 %441
    %v443 = vsub.f32 %v435, %v439
    %v444 = vsub.f32 %v436, %v442
    %v445 = vmul.f32 %v443, 1.442695
    %v446 = vpow.pop %v445
    %v447 = vmul.f32 %v444, 1.442695
    %v448 = vpow.pop %v447
    %v449 = vsel %vm270, %v446, 0.0
    %450 = vadd.xlane.f32.xlu0 %v449
    %v451 = vpop.xlane.xlu0 %450
    %v452 = vsel %vm270, %v448, 0.0
    %453 = vadd.xlane.f32.xlu0 %v452
    %v454 = vpop.xlane.xlu0 %453
    %v455 = vpack.c.bf16 %v448, %v446
    %457 = vrot.lane.b32.xlu0 %v213, 112
    %v458 = vpop.permute.xlu0 %457
    %v461 = vsel %vm270, %v455, 0
    %463 = vmatprep.subr.bf16.mxu0 0
    %464 = vmatpush1.bf16.msra.mxu0 %v458
    %465 = vmatprep.subr.bf16.mxu0 0
    %466 = vmatpush1.bf16.msra.mxu0 0
    %467 = vmatprep.subr.bf16.mxu0 0
    %468 = vmatpush1.bf16.msra.mxu0 0
    %469 = vmatprep.subr.bf16.mxu0 0
    %470 = vmatpush1.bf16.msra.mxu0 0
    %471 = vmatprep.subr.bf16.mxu0 0
    %472 = vmatpush1.bf16.msra.mxu0 0
    %473 = vmatprep.subr.bf16.mxu0 0
    %474 = vmatpush1.bf16.msra.mxu0 0
    %475 = vmatprep.subr.bf16.mxu0 0
    %476 = vmatpush1.bf16.msra.mxu0 0
    %477 = vmatprep.subr.bf16.mxu0 0
    %478 = vmatpush1.bf16.msra.mxu0 0
    %479 = vmatprep.subr.bf16.mxu0 0
    %480 = vmatpush1.bf16.msra.mxu0 0
    %481 = vmatprep.subr.bf16.mxu0 0
    %482 = vmatpush1.bf16.msra.mxu0 0
    %483 = vmatprep.subr.bf16.mxu0 0
    %484 = vmatpush1.bf16.msra.mxu0 0
    %485 = vmatprep.subr.bf16.mxu0 0
    %486 = vmatpush1.bf16.msra.mxu0 0
    %487 = vmatprep.subr.bf16.mxu0 0
    %488 = vmatpush1.bf16.msra.mxu0 0
    %489 = vmatprep.subr.bf16.mxu0 0
    %490 = vmatpush1.bf16.msra.mxu0 0
    %491 = vmatprep.subr.bf16.mxu0 0
    %492 = vmatpush1.bf16.msra.mxu0 0
    %493 = vmatprep.subr.bf16.mxu0 0
    %494 = vmatpush1.bf16.msra.mxu0 0
    %495 = vmatprep.mubr.bf16.mxu0 0
    %496 = vmatmul.mubr.bf16.gmra.mrb[0].mxu0 %v461
    %v497 = vpop.f32.mrb[0].mxu0
    %v498 = vadd.f32 0.0, %v497
    %v499 = vpop.f32.mrb[0].mxu0
    %v500 = vpop.f32.mrb[0].mxu0
    %v501 = vadd.f32 0.0, %v500
    %v502 = vpop.f32.mrb[0].mxu0
    %503 = vdwg.mxu0
    %v504 = vrcp.pop %v451
    %v505 = vrcp.pop %v454
    %v506 = vmul.f32 %v498, %v504
    %v507 = vmul.f32 %v501, %v505
    %508 = vrot.lane.b32.xlu0 %v342, 112
    %v509 = vpop.permute.xlu0 %508
    %v511 = vadd.f32 %v506, %v509
    %v512 = vadd.f32 %v507, %v509
    %v513 = vsel %vm270, %v511, 0.0
    %v514 = vsel %vm270, %v512, 0.0
    %v515 = vadd.f32 %v513, %v514
    %v516 = vrot.slane %v515, 4
    %v517 = vadd.f32 %v515, %v516
    %v518 = vrot.slane %v517, 2
    %v519 = vadd.f32 %v517, %v518
    %v520 = vrot.slane %v519, 1
    %v521 = vadd.f32 %v519, %v520
    %v522 = vmul.f32 %v521, %v355
    %v523 = vmul.f32 %v511, %v511
    %v524 = vmul.f32 %v512, %v512
    %v525 = vsel %vm270, %v523, 0.0
    %v526 = vsel %vm270, %v524, 0.0
    %v527 = vadd.f32 %v525, %v526
    %v528 = vrot.slane %v527, 4
    %v529 = vadd.f32 %v527, %v528
    %v530 = vrot.slane %v529, 2
    %v531 = vadd.f32 %v529, %v530
    %v532 = vrot.slane %v531, 1
    %v533 = vadd.f32 %v531, %v532
    %v534 = vmul.f32 %v533, %v355
    %v535 = vmul.f32 %v522, %v522
    %v536 = vsub.f32 %v534, %v535
    %v537 = vsub.f32 %v511, %v522
    %v538 = vsub.f32 %v512, %v522
    %v539 = vadd.f32 %v536, 1e-05
    %v540 = vrsqrt.pop %v539
    %v541 = vmul.f32 %v537, %v540
    %v542 = vmul.f32 %v538, %v540
    %543 = vrot.lane.b32.xlu0 %v381, 112
    %v544 = vpop.permute.xlu0 %543
    %v546 = vmul.f32 %v541, %v544
    %v547 = vmul.f32 %v542, %v544
    %548 = vrot.lane.b32.xlu0 %v389, 112
    %v549 = vpop.permute.xlu0 %548
    %v551 = vadd.f32 %v546, %v549
    %v552 = vadd.f32 %v547, %v549
    %v553 = vmax.f32 %v551, 0.0
    %v554 = vmax.f32 %v552, 0.0
    %557 = vrot.lane.b32.xlu0 %v553, 16
    %v558 = vpop.permute.xlu0 %557
    %559 = vrot.lane.b32.xlu0 %v554, 16
    %v560 = vpop.permute.xlu0 %559
    %vm563 = vcmask 261248
    %564 = vst.msk [vmem:[#allocation2] sm:$0xff] %vm563, %v558
    %565 = vst.msk [vmem:[#allocation2 + $0x8] sm:$0xff] %vm563, %v560
    %v566 = vld [vmem:[#allocation2] sm:$0xff]
    %v567 = vld [vmem:[#allocation2 + $0x8] sm:$0xff]
    %v568 = vpack.c.bf16 %v567, %v566
    %v569 = vld [vmem:[%s8] sm:$0xff]
    %v570 = vld [vmem:[%s8 + $0x8] sm:$0xff]
    %v571 = vld [vmem:[%s8 + $0x10] sm:$0xff]
    %v572 = vld [vmem:[%s8 + $0x18] sm:$0xff]
    %v573 = vpack.c.bf16 %v570, %v569
    %v574 = vpack.c.bf16 %v572, %v571
    %v576 = vsel %vm131, %v568, 0
    %578 = vmatprep.subr.bf16.mxu0 0
    %579 = vmatpush1.bf16.msra.mxu0 %v573
    %580 = vmatprep.subr.bf16.mxu0 0
    %581 = vmatpush1.bf16.msra.mxu0 %v574
    %582 = vmatprep.subr.bf16.mxu0 0
    %583 = vmatpush1.bf16.msra.mxu0 0
    %584 = vmatprep.subr.bf16.mxu0 0
    %585 = vmatpush1.bf16.msra.mxu0 0
    %586 = vmatprep.subr.bf16.mxu0 0
    %587 = vmatpush1.bf16.msra.mxu0 0
    %588 = vmatprep.subr.bf16.mxu0 0
    %589 = vmatpush1.bf16.msra.mxu0 0
    %590 = vmatprep.subr.bf16.mxu0 0
    %591 = vmatpush1.bf16.msra.mxu0 0
    %592 = vmatprep.subr.bf16.mxu0 0
    %593 = vmatpush1.bf16.msra.mxu0 0
    %594 = vmatprep.subr.bf16.mxu0 0
    %595 = vmatpush1.bf16.msra.mxu0 0
    %596 = vmatprep.subr.bf16.mxu0 0
    %597 = vmatpush1.bf16.msra.mxu0 0
    %598 = vmatprep.subr.bf16.mxu0 0
    %599 = vmatpush1.bf16.msra.mxu0 0
    %600 = vmatprep.subr.bf16.mxu0 0
    %601 = vmatpush1.bf16.msra.mxu0 0
    %602 = vmatprep.subr.bf16.mxu0 0
    %603 = vmatpush1.bf16.msra.mxu0 0
    %604 = vmatprep.subr.bf16.mxu0 0
    %605 = vmatpush1.bf16.msra.mxu0 0
    %606 = vmatprep.subr.bf16.mxu0 0
    %607 = vmatpush1.bf16.msra.mxu0 0
    %608 = vmatprep.subr.bf16.mxu0 0
    %609 = vmatpush1.bf16.msra.mxu0 0
    %610 = vmatprep.mubr.bf16.mxu0 0
    %611 = vmatmul.mubr.bf16.gmra.mrb[0].mxu0 %v576
    %v612 = vpop.f32.mrb[0].mxu0
    %v613 = vadd.f32 0.0, %v612
    %v614 = vpop.f32.mrb[0].mxu0
    %v615 = vpop.f32.mrb[0].mxu0
    %v616 = vadd.f32 0.0, %v615
    %v617 = vpop.f32.mrb[0].mxu0
    %618 = vdwg.mxu0
    %v619 = vld [vmem:[%s9] sm:$0xff]
    %v620 = vld [vmem:[%s9 + $0x8] sm:$0xff]
    %v621 = vld [vmem:[%s9 + $0x10] sm:$0xff]
    %v622 = vld [vmem:[%s9 + $0x18] sm:$0xff]
    %v623 = vld [vmem:[%s9 + $0x20] sm:$0xff]
    %v624 = vld [vmem:[%s9 + $0x28] sm:$0xff]
    %v625 = vld [vmem:[%s9 + $0x30] sm:$0xff]
    %v626 = vld [vmem:[%s9 + $0x38] sm:$0xff]
    %vm627 = vcmask 523264
    %v629 = vsel %vm627, %v613, 0
    %v632 = vsel %vm627, %v616, 0
    %634 = vmatprep.subr.mxu0 0.0
    %635 = vmatpush1.msra.mxu0 %v619
    %636 = vmatprep.subr.mxu0 0.0
    %637 = vmatpush1.msra.mxu0 %v620
    %638 = vmatprep.subr.mxu0 0.0
    %639 = vmatpush1.msra.mxu0 %v621
    %640 = vmatprep.subr.mxu0 0.0
    %641 = vmatpush1.msra.mxu0 %v622
    %642 = vmatprep.subr.mxu0 0.0
    %643 = vmatpush1.msra.mxu0 %v623
    %644 = vmatprep.subr.mxu0 0.0
    %645 = vmatpush1.msra.mxu0 %v624
    %646 = vmatprep.subr.mxu0 0.0
    %647 = vmatpush1.msra.mxu0 %v625
    %648 = vmatprep.subr.mxu0 0.0
    %649 = vmatpush1.msra.mxu0 %v626
    %650 = vmatprep.subr.mxu0 0.0
    %651 = vmatpush1.msra.mxu0 0.0
    %652 = vmatprep.subr.mxu0 0.0
    %653 = vmatpush1.msra.mxu0 0.0
    %654 = vmatprep.subr.mxu0 0.0
    %655 = vmatpush1.msra.mxu0 0.0
    %656 = vmatprep.subr.mxu0 0.0
    %657 = vmatpush1.msra.mxu0 0.0
    %658 = vmatprep.subr.mxu0 0.0
    %659 = vmatpush1.msra.mxu0 0.0
    %660 = vmatprep.subr.mxu0 0.0
    %661 = vmatpush1.msra.mxu0 0.0
    %662 = vmatprep.subr.mxu0 0.0
    %663 = vmatpush1.msra.mxu0 0.0
    %664 = vmatprep.subr.mxu0 0.0
    %665 = vmatpush1.msra.mxu0 0.0
    %666 = vmatprep.subr.mxu0 0.0
    %667 = vmatpush1.msra.mxu0 0.0
    %668 = vmatprep.subr.mxu0 0.0
    %669 = vmatpush1.msra.mxu0 0.0
    %670 = vmatprep.subr.mxu0 0.0
    %671 = vmatpush1.msra.mxu0 0.0
    %672 = vmatprep.subr.mxu0 0.0
    %673 = vmatpush1.msra.mxu0 0.0
    %674 = vmatprep.subr.mxu0 0.0
    %675 = vmatpush1.msra.mxu0 0.0
    %676 = vmatprep.subr.mxu0 0.0
    %677 = vmatpush1.msra.mxu0 0.0
    %678 = vmatprep.subr.mxu0 0.0
    %679 = vmatpush1.msra.mxu0 0.0
    %680 = vmatprep.subr.mxu0 0.0
    %681 = vmatpush1.msra.mxu0 0.0
    %682 = vmatprep.subr.mxu0 0.0
    %683 = vmatpush1.msra.mxu0 0.0
    %684 = vmatprep.subr.mxu0 0.0
    %685 = vmatpush1.msra.mxu0 0.0
    %686 = vmatprep.subr.mxu0 0.0
    %687 = vmatpush1.msra.mxu0 0.0
    %688 = vmatprep.subr.mxu0 0.0
    %689 = vmatpush1.msra.mxu0 0.0
    %690 = vmatprep.subr.mxu0 0.0
    %691 = vmatpush1.msra.mxu0 0.0
    %692 = vmatprep.subr.mxu0 0.0
    %693 = vmatpush1.msra.mxu0 0.0
    %694 = vmatprep.subr.mxu0 0.0
    %695 = vmatpush1.msra.mxu0 0.0
    %696 = vmatprep.subr.mxu0 0.0
    %697 = vmatpush1.msra.mxu0 0.0
    %698 = vmatprep.mubr.f32.mxu0 0.0
    %699 = vmatmul.mubr.f32.gmra.mrb[0].mxu0 %v629
    %v700 = vpop.f32.mrb[0].mxu0
    %v701 = vadd.f32 0.0, %v700
    %v702 = vpop.f32.mrb[0].mxu0
    %703 = vmatprep.mubr.f32.mxu0 0.0
    %704 = vmatmul.mubr.f32.gmra.mrb[0].mxu0 %v632
    %v705 = vpop.f32.mrb[0].mxu0
    %v706 = vadd.f32 0.0, %v705
    %v707 = vpop.f32.mrb[0].mxu0
    %708 = vdwg.mxu0
    %v709 = vpack.c.bf16 %v616, %v613
    %v710 = vld [vmem:[%s10] sm:$0x1]
    %v711 = vld [vmem:[%s11] sm:$0x1]
    %v712 = vld [vmem:[%s12] sm:$0x1]
    %714 = vset.pattern.permute.xlu0 1
    %715 = vperm.xlu0 %714, %v701
    %v716 = vpop.permute.xlu0 %715
    %719 = vset.pattern.permute.xlu0 1
    %720 = vperm.xlu0 %719, %v706
    %v721 = vpop.permute.xlu0 %720
    %723 = vset.pattern.permute.xlu0 0
    %724 = vperm.xlu0 %723, %v701
    %v725 = vpop.permute.xlu0 %724
    %726 = vset.pattern.permute.xlu0 0
    %727 = vperm.xlu0 %726, %v706
    %v728 = vpop.permute.xlu0 %727
    %v729 = vlaneseq
    %v730 = vshrl.u32 %v729, 7
    %v731 = vsub.s32 %v234, %v730
    %v732 = vrot.slane %v725, %v731
    %v733 = vlaneseq
    %v734 = vshrl.u32 %v733, 7
    %v735 = vsub.s32 %v239, %v734
    %v736 = vrot.slane %v728, %v735
    %v737 = vsel %vm244, %v736, %v732
    %v738 = vsel %vm247, %v737, %v737
    %v739 = vsel %vm249, %v737, %v738
    %v740 = vsel %vm251, %v737, %v739
    %v741 = vsel %vm253, %v737, %v740
    %v742 = vsel %vm255, %v737, %v741
    %v743 = vsel %vm257, %v737, %v742
    %v745 = vadd.f32 %v716, %v743
    %v746 = vadd.f32 %v721, %v743
    %vm747 = vcmp.gt.f32.partialorder %v745, 0.0
    %vm748 = vcmp.gt.f32.partialorder %v746, 0.0
    %v749 = vmul.f32 %v745, 0.2
    %v750 = vmul.f32 %v746, 0.2
    %v751 = vsel %vm747, %v745, %v749
    %v752 = vsel %vm748, %v746, %v750
    %v753 = vadd.f32 %v751, %v71
    %v754 = vadd.f32 %v752, %v72
    %v755 = vsel %vm270, %v753, -inf
    %756 = vmax.xlane.f32.xlu0 %v755
    %v757 = vpop.xlane.xlu0 %756
    %v758 = vsel %vm270, %v754, -inf
    %759 = vmax.xlane.f32.xlu0 %v758
    %v760 = vpop.xlane.xlu0 %759
    %v761 = vsub.f32 %v753, %v757
    %v762 = vsub.f32 %v754, %v760
    %v763 = vmul.f32 %v761, 1.442695
    %v764 = vpow.pop %v763
    %v765 = vmul.f32 %v762, 1.442695
    %v766 = vpow.pop %v765
    %v767 = vsel %vm270, %v764, 0.0
    %768 = vadd.xlane.f32.xlu0 %v767
    %v769 = vpop.xlane.xlu0 %768
    %v770 = vsel %vm270, %v766, 0.0
    %771 = vadd.xlane.f32.xlu0 %v770
    %v772 = vpop.xlane.xlu0 %771
    %v773 = vpack.c.bf16 %v766, %v764
    %v775 = vsel %vm270, %v773, 0
    %777 = vmatprep.subr.bf16.mxu0 0
    %778 = vmatpush1.bf16.msra.mxu0 %v709
    %779 = vmatprep.subr.bf16.mxu0 0
    %780 = vmatpush1.bf16.msra.mxu0 0
    %781 = vmatprep.subr.bf16.mxu0 0
    %782 = vmatpush1.bf16.msra.mxu0 0
    %783 = vmatprep.subr.bf16.mxu0 0
    %784 = vmatpush1.bf16.msra.mxu0 0
    %785 = vmatprep.subr.bf16.mxu0 0
    %786 = vmatpush1.bf16.msra.mxu0 0
    %787 = vmatprep.subr.bf16.mxu0 0
    %788 = vmatpush1.bf16.msra.mxu0 0
    %789 = vmatprep.subr.bf16.mxu0 0
    %790 = vmatpush1.bf16.msra.mxu0 0
    %791 = vmatprep.subr.bf16.mxu0 0
    %792 = vmatpush1.bf16.msra.mxu0 0
    %793 = vmatprep.subr.bf16.mxu0 0
    %794 = vmatpush1.bf16.msra.mxu0 0
    %795 = vmatprep.subr.bf16.mxu0 0
    %796 = vmatpush1.bf16.msra.mxu0 0
    %797 = vmatprep.subr.bf16.mxu0 0
    %798 = vmatpush1.bf16.msra.mxu0 0
    %799 = vmatprep.subr.bf16.mxu0 0
    %800 = vmatpush1.bf16.msra.mxu0 0
    %801 = vmatprep.subr.bf16.mxu0 0
    %802 = vmatpush1.bf16.msra.mxu0 0
    %803 = vmatprep.subr.bf16.mxu0 0
    %804 = vmatpush1.bf16.msra.mxu0 0
    %805 = vmatprep.subr.bf16.mxu0 0
    %806 = vmatpush1.bf16.msra.mxu0 0
    %807 = vmatprep.subr.bf16.mxu0 0
    %808 = vmatpush1.bf16.msra.mxu0 0
    %809 = vmatprep.mubr.bf16.mxu0 0
    %810 = vmatmul.mubr.bf16.gmra.mrb[0].mxu0 %v775
    %v811 = vpop.f32.mrb[0].mxu0
    %v812 = vadd.f32 0.0, %v811
    %v813 = vpop.f32.mrb[0].mxu0
    %v814 = vpop.f32.mrb[0].mxu0
    %v815 = vadd.f32 0.0, %v814
    %v816 = vpop.f32.mrb[0].mxu0
    %817 = vdwg.mxu0
    %v818 = vrcp.pop %v769
    %v819 = vrcp.pop %v772
    %v820 = vmul.f32 %v812, %v818
    %v821 = vmul.f32 %v815, %v819
    %v823 = vlaneseq
    %v824 = vshrl.u32 %v823, 7
    %v825 = vsub.s32 0, %v824
    %v826 = vrot.slane %v710, %v825
    %v828 = vadd.f32 %v820, %v826
    %v829 = vadd.f32 %v821, %v826
    %v830 = vsel %vm131, %v828, 0.0
    %v831 = vsel %vm131, %v829, 0.0
    %v832 = vadd.f32 %v830, %v831
    %v833 = vrot.slane %v832, 4
    %v834 = vadd.f32 %v832, %v833
    %v835 = vrot.slane %v834, 2
    %v836 = vadd.f32 %v834, %v835
    %v837 = vrot.slane %v836, 1
    %v838 = vadd.f32 %v836, %v837
    %v839 = vmul.f32 %v838, %v355
    %v840 = vmul.f32 %v828, %v828
    %v841 = vmul.f32 %v829, %v829
    %v842 = vsel %vm131, %v840, 0.0
    %v843 = vsel %vm131, %v841, 0.0
    %v844 = vadd.f32 %v842, %v843
    %v845 = vrot.slane %v844, 4
    %v846 = vadd.f32 %v844, %v845
    %v847 = vrot.slane %v846, 2
    %v848 = vadd.f32 %v846, %v847
    %v849 = vrot.slane %v848, 1
    %v850 = vadd.f32 %v848, %v849
    %v851 = vmul.f32 %v850, %v355
    %v852 = vmul.f32 %v839, %v839
    %v853 = vsub.f32 %v851, %v852
    %v854 = vsub.f32 %v828, %v839
    %v855 = vsub.f32 %v829, %v839
    %v856 = vadd.f32 %v853, 1e-05
    %v857 = vrsqrt.pop %v856
    %v858 = vmul.f32 %v854, %v857
    %v859 = vmul.f32 %v855, %v857
    %v861 = vlaneseq
    %v862 = vshrl.u32 %v861, 7
    %v863 = vsub.s32 0, %v862
    %v864 = vrot.slane %v711, %v863
    %v866 = vmul.f32 %v858, %v864
    %v867 = vmul.f32 %v859, %v864
    %v869 = vlaneseq
    %v870 = vshrl.u32 %v869, 7
    %v871 = vsub.s32 0, %v870
    %v872 = vrot.slane %v712, %v871
    %v874 = vadd.f32 %v866, %v872
    %v875 = vadd.f32 %v867, %v872
    %v876 = vmax.f32 %v874, 0.0
    %v877 = vmax.f32 %v875, 0.0
    %878 = vst.msk [vmem:[#allocation3] sm:$0xff] %vm131, %v876
    %879 = vst.msk [vmem:[#allocation3 + $0x8] sm:$0xff] %vm131, %v877
    %880 = vset.pattern.permute.xlu0 3
    %881 = vperm.xlu0 %880, %v701
    %v882 = vpop.permute.xlu0 %881
    %884 = vset.pattern.permute.xlu0 3
    %885 = vperm.xlu0 %884, %v706
    %v886 = vpop.permute.xlu0 %885
    %888 = vset.pattern.permute.xlu0 2
    %889 = vperm.xlu0 %888, %v701
    %v890 = vpop.permute.xlu0 %889
    %891 = vset.pattern.permute.xlu0 2
    %892 = vperm.xlu0 %891, %v706
    %v893 = vpop.permute.xlu0 %892
    %v894 = vlaneseq
    %v895 = vshrl.u32 %v894, 7
    %v896 = vsub.s32 %v234, %v895
    %v897 = vrot.slane %v890, %v896
    %v898 = vlaneseq
    %v899 = vshrl.u32 %v898, 7
    %v900 = vsub.s32 %v239, %v899
    %v901 = vrot.slane %v893, %v900
    %v902 = vsel %vm244, %v901, %v897
    %v903 = vsel %vm247, %v902, %v902
    %v904 = vsel %vm249, %v902, %v903
    %v905 = vsel %vm251, %v902, %v904
    %v906 = vsel %vm253, %v902, %v905
    %v907 = vsel %vm255, %v902, %v906
    %v908 = vsel %vm257, %v902, %v907
    %v910 = vadd.f32 %v882, %v908
    %v911 = vadd.f32 %v886, %v908
    %vm912 = vcmp.gt.f32.partialorder %v910, 0.0
    %vm913 = vcmp.gt.f32.partialorder %v911, 0.0
    %v914 = vmul.f32 %v910, 0.2
    %v915 = vmul.f32 %v911, 0.2
    %v916 = vsel %vm912, %v910, %v914
    %v917 = vsel %vm913, %v911, %v915
    %v918 = vadd.f32 %v916, %v71
    %v919 = vadd.f32 %v917, %v72
    %v920 = vsel %vm270, %v918, -inf
    %921 = vmax.xlane.f32.xlu0 %v920
    %v922 = vpop.xlane.xlu0 %921
    %v923 = vsel %vm270, %v919, -inf
    %924 = vmax.xlane.f32.xlu0 %v923
    %v925 = vpop.xlane.xlu0 %924
    %v926 = vsub.f32 %v918, %v922
    %v927 = vsub.f32 %v919, %v925
    %v928 = vmul.f32 %v926, 1.442695
    %v929 = vpow.pop %v928
    %v930 = vmul.f32 %v927, 1.442695
    %v931 = vpow.pop %v930
    %v932 = vsel %vm270, %v929, 0.0
    %933 = vadd.xlane.f32.xlu0 %v932
    %v934 = vpop.xlane.xlu0 %933
    %v935 = vsel %vm270, %v931, 0.0
    %936 = vadd.xlane.f32.xlu0 %v935
    %v937 = vpop.xlane.xlu0 %936
    %v938 = vpack.c.bf16 %v931, %v929
    %940 = vrot.lane.b32.xlu0 %v709, 96
    %v941 = vpop.permute.xlu0 %940
    %v944 = vsel %vm270, %v938, 0
    %946 = vmatprep.subr.bf16.mxu0 0
    %947 = vmatpush1.bf16.msra.mxu0 %v941
    %948 = vmatprep.subr.bf16.mxu0 0
    %949 = vmatpush1.bf16.msra.mxu0 0
    %950 = vmatprep.subr.bf16.mxu0 0
    %951 = vmatpush1.bf16.msra.mxu0 0
    %952 = vmatprep.subr.bf16.mxu0 0
    %953 = vmatpush1.bf16.msra.mxu0 0
    %954 = vmatprep.subr.bf16.mxu0 0
    %955 = vmatpush1.bf16.msra.mxu0 0
    %956 = vmatprep.subr.bf16.mxu0 0
    %957 = vmatpush1.bf16.msra.mxu0 0
    %958 = vmatprep.subr.bf16.mxu0 0
    %959 = vmatpush1.bf16.msra.mxu0 0
    %960 = vmatprep.subr.bf16.mxu0 0
    %961 = vmatpush1.bf16.msra.mxu0 0
    %962 = vmatprep.subr.bf16.mxu0 0
    %963 = vmatpush1.bf16.msra.mxu0 0
    %964 = vmatprep.subr.bf16.mxu0 0
    %965 = vmatpush1.bf16.msra.mxu0 0
    %966 = vmatprep.subr.bf16.mxu0 0
    %967 = vmatpush1.bf16.msra.mxu0 0
    %968 = vmatprep.subr.bf16.mxu0 0
    %969 = vmatpush1.bf16.msra.mxu0 0
    %970 = vmatprep.subr.bf16.mxu0 0
    %971 = vmatpush1.bf16.msra.mxu0 0
    %972 = vmatprep.subr.bf16.mxu0 0
    %973 = vmatpush1.bf16.msra.mxu0 0
    %974 = vmatprep.subr.bf16.mxu0 0
    %975 = vmatpush1.bf16.msra.mxu0 0
    %976 = vmatprep.subr.bf16.mxu0 0
    %977 = vmatpush1.bf16.msra.mxu0 0
    %978 = vmatprep.mubr.bf16.mxu0 0
    %979 = vmatmul.mubr.bf16.gmra.mrb[0].mxu0 %v944
    %v980 = vpop.f32.mrb[0].mxu0
    %v981 = vadd.f32 0.0, %v980
    %v982 = vpop.f32.mrb[0].mxu0
    %v983 = vpop.f32.mrb[0].mxu0
    %v984 = vadd.f32 0.0, %v983
    %v985 = vpop.f32.mrb[0].mxu0
    %986 = vdwg.mxu0
    %v987 = vrcp.pop %v934
    %v988 = vrcp.pop %v937
    %v989 = vmul.f32 %v981, %v987
    %v990 = vmul.f32 %v984, %v988
    %991 = vrot.lane.b32.xlu0 %v826, 96
    %v992 = vpop.permute.xlu0 %991
    %v994 = vadd.f32 %v989, %v992
    %v995 = vadd.f32 %v990, %v992
    %v996 = vsel %vm131, %v994, 0.0
    %v997 = vsel %vm131, %v995, 0.0
    %v998 = vadd.f32 %v996, %v997
    %v999 = vrot.slane %v998, 4
    %v1000 = vadd.f32 %v998, %v999
    %v1001 = vrot.slane %v1000, 2
    %v1002 = vadd.f32 %v1000, %v1001
    %v1003 = vrot.slane %v1002, 1
    %v1004 = vadd.f32 %v1002, %v1003
    %v1005 = vmul.f32 %v1004, %v355
    %v1006 = vmul.f32 %v994, %v994
    %v1007 = vmul.f32 %v995, %v995
    %v1008 = vsel %vm131, %v1006, 0.0
    %v1009 = vsel %vm131, %v1007, 0.0
    %v1010 = vadd.f32 %v1008, %v1009
    %v1011 = vrot.slane %v1010, 4
    %v1012 = vadd.f32 %v1010, %v1011
    %v1013 = vrot.slane %v1012, 2
    %v1014 = vadd.f32 %v1012, %v1013
    %v1015 = vrot.slane %v1014, 1
    %v1016 = vadd.f32 %v1014, %v1015
    %v1017 = vmul.f32 %v1016, %v355
    %v1018 = vmul.f32 %v1005, %v1005
    %v1019 = vsub.f32 %v1017, %v1018
    %v1020 = vsub.f32 %v994, %v1005
    %v1021 = vsub.f32 %v995, %v1005
    %v1022 = vadd.f32 %v1019, 1e-05
    %v1023 = vrsqrt.pop %v1022
    %v1024 = vmul.f32 %v1020, %v1023
    %v1025 = vmul.f32 %v1021, %v1023
    %1026 = vrot.lane.b32.xlu0 %v864, 96
    %v1027 = vpop.permute.xlu0 %1026
    %v1029 = vmul.f32 %v1024, %v1027
    %v1030 = vmul.f32 %v1025, %v1027
    %1031 = vrot.lane.b32.xlu0 %v872, 96
    %v1032 = vpop.permute.xlu0 %1031
    %v1034 = vadd.f32 %v1029, %v1032
    %v1035 = vadd.f32 %v1030, %v1032
    %v1036 = vmax.f32 %v1034, 0.0
    %v1037 = vmax.f32 %v1035, 0.0
    %1040 = vrot.lane.b32.xlu0 %v1036, 32
    %v1041 = vpop.permute.xlu0 %1040
    %1042 = vrot.lane.b32.xlu0 %v1037, 32
    %v1043 = vpop.permute.xlu0 %1042
    %vm1046 = vcmask 523520
    %1047 = vst.msk [vmem:[#allocation3] sm:$0xff] %vm1046, %v1041
    %1048 = vst.msk [vmem:[#allocation3 + $0x8] sm:$0xff] %vm1046, %v1043
    %v1049 = vld [vmem:[#allocation3] sm:$0xff]
    %v1050 = vld [vmem:[#allocation3 + $0x8] sm:$0xff]
    %v1051 = vpack.c.bf16 %v1050, %v1049
    %v1052 = vld [vmem:[%s13] sm:$0xff]
    %v1053 = vld [vmem:[%s13 + $0x8] sm:$0xff]
    %v1054 = vld [vmem:[%s13 + $0x10] sm:$0xff]
    %v1055 = vld [vmem:[%s13 + $0x18] sm:$0xff]
    %v1056 = vld [vmem:[%s13 + $0x20] sm:$0xff]
    %v1057 = vld [vmem:[%s13 + $0x28] sm:$0xff]
    %v1058 = vld [vmem:[%s13 + $0x30] sm:$0xff]
    %v1059 = vld [vmem:[%s13 + $0x38] sm:$0xff]
    %v1060 = vpack.c.bf16 %v1053, %v1052
    %v1061 = vpack.c.bf16 %v1055, %v1054
    %v1062 = vpack.c.bf16 %v1057, %v1056
    %v1063 = vpack.c.bf16 %v1059, %v1058
    %v1065 = vsel %vm627, %v1051, 0
    %1067 = vmatprep.subr.bf16.mxu0 0
    %1068 = vmatpush1.bf16.msra.mxu0 %v1060
    %1069 = vmatprep.subr.bf16.mxu0 0
    %1070 = vmatpush1.bf16.msra.mxu0 %v1061
    %1071 = vmatprep.subr.bf16.mxu0 0
    %1072 = vmatpush1.bf16.msra.mxu0 %v1062
    %1073 = vmatprep.subr.bf16.mxu0 0
    %1074 = vmatpush1.bf16.msra.mxu0 %v1063
    %1075 = vmatprep.subr.bf16.mxu0 0
    %1076 = vmatpush1.bf16.msra.mxu0 0
    %1077 = vmatprep.subr.bf16.mxu0 0
    %1078 = vmatpush1.bf16.msra.mxu0 0
    %1079 = vmatprep.subr.bf16.mxu0 0
    %1080 = vmatpush1.bf16.msra.mxu0 0
    %1081 = vmatprep.subr.bf16.mxu0 0
    %1082 = vmatpush1.bf16.msra.mxu0 0
    %1083 = vmatprep.subr.bf16.mxu0 0
    %1084 = vmatpush1.bf16.msra.mxu0 0
    %1085 = vmatprep.subr.bf16.mxu0 0
    %1086 = vmatpush1.bf16.msra.mxu0 0
    %1087 = vmatprep.subr.bf16.mxu0 0
    %1088 = vmatpush1.bf16.msra.mxu0 0
    %1089 = vmatprep.subr.bf16.mxu0 0
    %1090 = vmatpush1.bf16.msra.mxu0 0
    %1091 = vmatprep.subr.bf16.mxu0 0
    %1092 = vmatpush1.bf16.msra.mxu0 0
    %1093 = vmatprep.subr.bf16.mxu0 0
    %1094 = vmatpush1.bf16.msra.mxu0 0
    %1095 = vmatprep.subr.bf16.mxu0 0
    %1096 = vmatpush1.bf16.msra.mxu0 0
    %1097 = vmatprep.subr.bf16.mxu0 0
    %1098 = vmatpush1.bf16.msra.mxu0 0
    %1099 = vmatprep.mubr.bf16.mxu0 0
    %1100 = vmatmul.mubr.bf16.gmra.mrb[0].mxu0 %v1065
    %v1101 = vpop.f32.mrb[0].mxu0
    %v1102 = vadd.f32 0.0, %v1101
    %v1103 = vpop.f32.mrb[0].mxu0
    %v1104 = vpop.f32.mrb[0].mxu0
    %v1105 = vadd.f32 0.0, %v1104
    %v1106 = vpop.f32.mrb[0].mxu0
    %1107 = vdwg.mxu0
    %v1108 = vld [vmem:[%s14] sm:$0xff]
    %v1109 = vld [vmem:[%s14 + $0x8] sm:$0xff]
    %v1110 = vld [vmem:[%s14 + $0x10] sm:$0xff]
    %v1111 = vld [vmem:[%s14 + $0x18] sm:$0xff]
    %v1112 = vld [vmem:[%s14 + $0x20] sm:$0xff]
    %v1113 = vld [vmem:[%s14 + $0x28] sm:$0xff]
    %v1114 = vld [vmem:[%s14 + $0x30] sm:$0xff]
    %v1115 = vld [vmem:[%s14 + $0x38] sm:$0xff]
    %v1116 = vld [vmem:[%s14 + $0x40] sm:$0xff]
    %v1117 = vld [vmem:[%s14 + $0x48] sm:$0xff]
    %v1118 = vld [vmem:[%s14 + $0x50] sm:$0xff]
    %v1119 = vld [vmem:[%s14 + $0x58] sm:$0xff]
    %v1120 = vld [vmem:[%s14 + $0x60] sm:$0xff]
    %v1121 = vld [vmem:[%s14 + $0x68] sm:$0xff]
    %v1122 = vld [vmem:[%s14 + $0x70] sm:$0xff]
    %v1123 = vld [vmem:[%s14 + $0x78] sm:$0xff]
    %1124 = vmatprep.subr.mxu0 0.0
    %1125 = vmatpush1.msra.mxu0 %v1108
    %1126 = vmatprep.subr.mxu0 0.0
    %1127 = vmatpush1.msra.mxu0 %v1109
    %1128 = vmatprep.subr.mxu0 0.0
    %1129 = vmatpush1.msra.mxu0 %v1110
    %1130 = vmatprep.subr.mxu0 0.0
    %1131 = vmatpush1.msra.mxu0 %v1111
    %1132 = vmatprep.subr.mxu0 0.0
    %1133 = vmatpush1.msra.mxu0 %v1112
    %1134 = vmatprep.subr.mxu0 0.0
    %1135 = vmatpush1.msra.mxu0 %v1113
    %1136 = vmatprep.subr.mxu0 0.0
    %1137 = vmatpush1.msra.mxu0 %v1114
    %1138 = vmatprep.subr.mxu0 0.0
    %1139 = vmatpush1.msra.mxu0 %v1115
    %1140 = vmatprep.subr.mxu0 0.0
    %1141 = vmatpush1.msra.mxu0 %v1116
    %1142 = vmatprep.subr.mxu0 0.0
    %1143 = vmatpush1.msra.mxu0 %v1117
    %1144 = vmatprep.subr.mxu0 0.0
    %1145 = vmatpush1.msra.mxu0 %v1118
    %1146 = vmatprep.subr.mxu0 0.0
    %1147 = vmatpush1.msra.mxu0 %v1119
    %1148 = vmatprep.subr.mxu0 0.0
    %1149 = vmatpush1.msra.mxu0 %v1120
    %1150 = vmatprep.subr.mxu0 0.0
    %1151 = vmatpush1.msra.mxu0 %v1121
    %1152 = vmatprep.subr.mxu0 0.0
    %1153 = vmatpush1.msra.mxu0 %v1122
    %1154 = vmatprep.subr.mxu0 0.0
    %1155 = vmatpush1.msra.mxu0 %v1123
    %1156 = vmatprep.subr.mxu0 0.0
    %1157 = vmatpush1.msra.mxu0 0.0
    %1158 = vmatprep.subr.mxu0 0.0
    %1159 = vmatpush1.msra.mxu0 0.0
    %1160 = vmatprep.subr.mxu0 0.0
    %1161 = vmatpush1.msra.mxu0 0.0
    %1162 = vmatprep.subr.mxu0 0.0
    %1163 = vmatpush1.msra.mxu0 0.0
    %1164 = vmatprep.subr.mxu0 0.0
    %1165 = vmatpush1.msra.mxu0 0.0
    %1166 = vmatprep.subr.mxu0 0.0
    %1167 = vmatpush1.msra.mxu0 0.0
    %1168 = vmatprep.subr.mxu0 0.0
    %1169 = vmatpush1.msra.mxu0 0.0
    %1170 = vmatprep.subr.mxu0 0.0
    %1171 = vmatpush1.msra.mxu0 0.0
    %1172 = vmatprep.subr.mxu0 0.0
    %1173 = vmatpush1.msra.mxu0 0.0
    %1174 = vmatprep.subr.mxu0 0.0
    %1175 = vmatpush1.msra.mxu0 0.0
    %1176 = vmatprep.subr.mxu0 0.0
    %1177 = vmatpush1.msra.mxu0 0.0
    %1178 = vmatprep.subr.mxu0 0.0
    %1179 = vmatpush1.msra.mxu0 0.0
    %1180 = vmatprep.subr.mxu0 0.0
    %1181 = vmatpush1.msra.mxu0 0.0
    %1182 = vmatprep.subr.mxu0 0.0
    %1183 = vmatpush1.msra.mxu0 0.0
    %1184 = vmatprep.subr.mxu0 0.0
    %1185 = vmatpush1.msra.mxu0 0.0
    %1186 = vmatprep.subr.mxu0 0.0
    %1187 = vmatpush1.msra.mxu0 0.0
    %1188 = vmatprep.mubr.f32.mxu0 0.0
    %1189 = vmatmul.mubr.f32.gmra.mrb[0].mxu0 %v1102
    %v1190 = vpop.f32.mrb[0].mxu0
    %v1191 = vadd.f32 0.0, %v1190
    %v1192 = vpop.f32.mrb[0].mxu0
    %1193 = vmatprep.mubr.f32.mxu0 0.0
    %1194 = vmatmul.mubr.f32.gmra.mrb[0].mxu0 %v1105
    %v1195 = vpop.f32.mrb[0].mxu0
    %v1196 = vadd.f32 0.0, %v1195
    %v1197 = vpop.f32.mrb[0].mxu0
    %1198 = vdwg.mxu0
    %v1199 = vpack.c.bf16 %v1105, %v1102
    %v1200 = vld [vmem:[%s15] sm:$0x1]
    %v1201 = vld [vmem:[%s16] sm:$0x1]
    %v1202 = vld [vmem:[%s17] sm:$0x1]
    %1204 = vset.pattern.permute.xlu0 1
    %1205 = vperm.xlu0 %1204, %v1191
    %v1206 = vpop.permute.xlu0 %1205
    %1209 = vset.pattern.permute.xlu0 1
    %1210 = vperm.xlu0 %1209, %v1196
    %v1211 = vpop.permute.xlu0 %1210
    %1213 = vset.pattern.permute.xlu0 0
    %1214 = vperm.xlu0 %1213, %v1191
    %v1215 = vpop.permute.xlu0 %1214
    %1216 = vset.pattern.permute.xlu0 0
    %1217 = vperm.xlu0 %1216, %v1196
    %v1218 = vpop.permute.xlu0 %1217
    %v1219 = vlaneseq
    %v1220 = vshrl.u32 %v1219, 7
    %v1221 = vsub.s32 %v234, %v1220
    %v1222 = vrot.slane %v1215, %v1221
    %v1223 = vlaneseq
    %v1224 = vshrl.u32 %v1223, 7
    %v1225 = vsub.s32 %v239, %v1224
    %v1226 = vrot.slane %v1218, %v1225
    %v1227 = vsel %vm244, %v1226, %v1222
    %v1228 = vsel %vm247, %v1227, %v1227
    %v1229 = vsel %vm249, %v1227, %v1228
    %v1230 = vsel %vm251, %v1227, %v1229
    %v1231 = vsel %vm253, %v1227, %v1230
    %v1232 = vsel %vm255, %v1227, %v1231
    %v1233 = vsel %vm257, %v1227, %v1232
    %v1235 = vadd.f32 %v1206, %v1233
    %v1236 = vadd.f32 %v1211, %v1233
    %vm1237 = vcmp.gt.f32.partialorder %v1235, 0.0
    %vm1238 = vcmp.gt.f32.partialorder %v1236, 0.0
    %v1239 = vmul.f32 %v1235, 0.2
    %v1240 = vmul.f32 %v1236, 0.2
    %v1241 = vsel %vm1237, %v1235, %v1239
    %v1242 = vsel %vm1238, %v1236, %v1240
    %v1243 = vadd.f32 %v1241, %v71
    %v1244 = vadd.f32 %v1242, %v72
    %v1245 = vsel %vm270, %v1243, -inf
    %1246 = vmax.xlane.f32.xlu0 %v1245
    %v1247 = vpop.xlane.xlu0 %1246
    %v1248 = vsel %vm270, %v1244, -inf
    %1249 = vmax.xlane.f32.xlu0 %v1248
    %v1250 = vpop.xlane.xlu0 %1249
    %v1251 = vsub.f32 %v1243, %v1247
    %v1252 = vsub.f32 %v1244, %v1250
    %v1253 = vmul.f32 %v1251, 1.442695
    %v1254 = vpow.pop %v1253
    %v1255 = vmul.f32 %v1252, 1.442695
    %v1256 = vpow.pop %v1255
    %v1257 = vsel %vm270, %v1254, 0.0
    %1258 = vadd.xlane.f32.xlu0 %v1257
    %v1259 = vpop.xlane.xlu0 %1258
    %v1260 = vsel %vm270, %v1256, 0.0
    %1261 = vadd.xlane.f32.xlu0 %v1260
    %v1262 = vpop.xlane.xlu0 %1261
    %v1263 = vpack.c.bf16 %v1256, %v1254
    %v1265 = vsel %vm270, %v1263, 0
    %1267 = vmatprep.subr.bf16.mxu0 0
    %1268 = vmatpush1.bf16.msra.mxu0 %v1199
    %1269 = vmatprep.subr.bf16.mxu0 0
    %1270 = vmatpush1.bf16.msra.mxu0 0
    %1271 = vmatprep.subr.bf16.mxu0 0
    %1272 = vmatpush1.bf16.msra.mxu0 0
    %1273 = vmatprep.subr.bf16.mxu0 0
    %1274 = vmatpush1.bf16.msra.mxu0 0
    %1275 = vmatprep.subr.bf16.mxu0 0
    %1276 = vmatpush1.bf16.msra.mxu0 0
    %1277 = vmatprep.subr.bf16.mxu0 0
    %1278 = vmatpush1.bf16.msra.mxu0 0
    %1279 = vmatprep.subr.bf16.mxu0 0
    %1280 = vmatpush1.bf16.msra.mxu0 0
    %1281 = vmatprep.subr.bf16.mxu0 0
    %1282 = vmatpush1.bf16.msra.mxu0 0
    %1283 = vmatprep.subr.bf16.mxu0 0
    %1284 = vmatpush1.bf16.msra.mxu0 0
    %1285 = vmatprep.subr.bf16.mxu0 0
    %1286 = vmatpush1.bf16.msra.mxu0 0
    %1287 = vmatprep.subr.bf16.mxu0 0
    %1288 = vmatpush1.bf16.msra.mxu0 0
    %1289 = vmatprep.subr.bf16.mxu0 0
    %1290 = vmatpush1.bf16.msra.mxu0 0
    %1291 = vmatprep.subr.bf16.mxu0 0
    %1292 = vmatpush1.bf16.msra.mxu0 0
    %1293 = vmatprep.subr.bf16.mxu0 0
    %1294 = vmatpush1.bf16.msra.mxu0 0
    %1295 = vmatprep.subr.bf16.mxu0 0
    %1296 = vmatpush1.bf16.msra.mxu0 0
    %1297 = vmatprep.subr.bf16.mxu0 0
    %1298 = vmatpush1.bf16.msra.mxu0 0
    %1299 = vmatprep.mubr.bf16.mxu0 0
    %1300 = vmatmul.mubr.bf16.gmra.mrb[0].mxu0 %v1265
    %v1301 = vpop.f32.mrb[0].mxu0
    %v1302 = vadd.f32 0.0, %v1301
    %v1303 = vpop.f32.mrb[0].mxu0
    %v1304 = vpop.f32.mrb[0].mxu0
    %v1305 = vadd.f32 0.0, %v1304
    %v1306 = vpop.f32.mrb[0].mxu0
    %1307 = vdwg.mxu0
    %v1308 = vrcp.pop %v1259
    %v1309 = vrcp.pop %v1262
    %v1310 = vmul.f32 %v1302, %v1308
    %v1311 = vmul.f32 %v1305, %v1309
    %v1313 = vlaneseq
    %v1314 = vshrl.u32 %v1313, 7
    %v1315 = vsub.s32 0, %v1314
    %v1316 = vrot.slane %v1200, %v1315
    %v1318 = vadd.f32 %v1310, %v1316
    %v1319 = vadd.f32 %v1311, %v1316
    %v1320 = vsel %vm627, %v1318, 0.0
    %v1321 = vsel %vm627, %v1319, 0.0
    %v1322 = vadd.f32 %v1320, %v1321
    %v1323 = vrot.slane %v1322, 4
    %v1324 = vadd.f32 %v1322, %v1323
    %v1325 = vrot.slane %v1324, 2
    %v1326 = vadd.f32 %v1324, %v1325
    %v1327 = vrot.slane %v1326, 1
    %v1328 = vadd.f32 %v1326, %v1327
    %v1329 = vmul.f32 %v1328, %v355
    %v1330 = vmul.f32 %v1318, %v1318
    %v1331 = vmul.f32 %v1319, %v1319
    %v1332 = vsel %vm627, %v1330, 0.0
    %v1333 = vsel %vm627, %v1331, 0.0
    %v1334 = vadd.f32 %v1332, %v1333
    %v1335 = vrot.slane %v1334, 4
    %v1336 = vadd.f32 %v1334, %v1335
    %v1337 = vrot.slane %v1336, 2
    %v1338 = vadd.f32 %v1336, %v1337
    %v1339 = vrot.slane %v1338, 1
    %v1340 = vadd.f32 %v1338, %v1339
    %v1341 = vmul.f32 %v1340, %v355
    %v1342 = vmul.f32 %v1329, %v1329
    %v1343 = vsub.f32 %v1341, %v1342
    %v1344 = vsub.f32 %v1318, %v1329
    %v1345 = vsub.f32 %v1319, %v1329
    %v1346 = vadd.f32 %v1343, 1e-05
    %v1347 = vrsqrt.pop %v1346
    %v1348 = vmul.f32 %v1344, %v1347
    %v1349 = vmul.f32 %v1345, %v1347
    %v1351 = vlaneseq
    %v1352 = vshrl.u32 %v1351, 7
    %v1353 = vsub.s32 0, %v1352
    %v1354 = vrot.slane %v1201, %v1353
    %v1356 = vmul.f32 %v1348, %v1354
    %v1357 = vmul.f32 %v1349, %v1354
    %v1359 = vlaneseq
    %v1360 = vshrl.u32 %v1359, 7
    %v1361 = vsub.s32 0, %v1360
    %v1362 = vrot.slane %v1202, %v1361
    %v1364 = vadd.f32 %v1356, %v1362
    %v1365 = vadd.f32 %v1357, %v1362
    %v1366 = vmax.f32 %v1364, 0.0
    %v1367 = vmax.f32 %v1365, 0.0
    %1368 = vst.msk [vmem:[#allocation4] sm:$0xff] %vm627, %v1366
    %1369 = vst.msk [vmem:[#allocation4 + $0x8] sm:$0xff] %vm627, %v1367
    %1370 = vset.pattern.permute.xlu0 3
    %1371 = vperm.xlu0 %1370, %v1191
    %v1372 = vpop.permute.xlu0 %1371
    %1374 = vset.pattern.permute.xlu0 3
    %1375 = vperm.xlu0 %1374, %v1196
    %v1376 = vpop.permute.xlu0 %1375
    %1378 = vset.pattern.permute.xlu0 2
    %1379 = vperm.xlu0 %1378, %v1191
    %v1380 = vpop.permute.xlu0 %1379
    %1381 = vset.pattern.permute.xlu0 2
    %1382 = vperm.xlu0 %1381, %v1196
    %v1383 = vpop.permute.xlu0 %1382
    %v1384 = vlaneseq
    %v1385 = vshrl.u32 %v1384, 7
    %v1386 = vsub.s32 %v234, %v1385
    %v1387 = vrot.slane %v1380, %v1386
    %v1388 = vlaneseq
    %v1389 = vshrl.u32 %v1388, 7
    %v1390 = vsub.s32 %v239, %v1389
    %v1391 = vrot.slane %v1383, %v1390
    %v1392 = vsel %vm244, %v1391, %v1387
    %v1393 = vsel %vm247, %v1392, %v1392
    %v1394 = vsel %vm249, %v1392, %v1393
    %v1395 = vsel %vm251, %v1392, %v1394
    %v1396 = vsel %vm253, %v1392, %v1395
    %v1397 = vsel %vm255, %v1392, %v1396
    %v1398 = vsel %vm257, %v1392, %v1397
    %v1400 = vadd.f32 %v1372, %v1398
    %v1401 = vadd.f32 %v1376, %v1398
    %vm1402 = vcmp.gt.f32.partialorder %v1400, 0.0
    %vm1403 = vcmp.gt.f32.partialorder %v1401, 0.0
    %v1404 = vmul.f32 %v1400, 0.2
    %v1405 = vmul.f32 %v1401, 0.2
    %v1406 = vsel %vm1402, %v1400, %v1404
    %v1407 = vsel %vm1403, %v1401, %v1405
    %v1408 = vadd.f32 %v1406, %v71
    %v1409 = vadd.f32 %v1407, %v72
    %v1410 = vsel %vm270, %v1408, -inf
    %1411 = vmax.xlane.f32.xlu0 %v1410
    %v1412 = vpop.xlane.xlu0 %1411
    %v1413 = vsel %vm270, %v1409, -inf
    %1414 = vmax.xlane.f32.xlu0 %v1413
    %v1415 = vpop.xlane.xlu0 %1414
    %v1416 = vsub.f32 %v1408, %v1412
    %v1417 = vsub.f32 %v1409, %v1415
    %v1418 = vmul.f32 %v1416, 1.442695
    %v1419 = vpow.pop %v1418
    %v1420 = vmul.f32 %v1417, 1.442695
    %v1421 = vpow.pop %v1420
    %v1422 = vsel %vm270, %v1419, 0.0
    %1423 = vadd.xlane.f32.xlu0 %v1422
    %v1424 = vpop.xlane.xlu0 %1423
    %v1425 = vsel %vm270, %v1421, 0.0
    %1426 = vadd.xlane.f32.xlu0 %v1425
    %v1427 = vpop.xlane.xlu0 %1426
    %v1428 = vpack.c.bf16 %v1421, %v1419
    %1430 = vrot.lane.b32.xlu0 %v1199, 64
    %v1431 = vpop.permute.xlu0 %1430
    %v1434 = vsel %vm270, %v1428, 0
    %1436 = vmatprep.subr.bf16.mxu0 0
    %1437 = vmatpush1.bf16.msra.mxu0 %v1431
    %1438 = vmatprep.subr.bf16.mxu0 0
    %1439 = vmatpush1.bf16.msra.mxu0 0
    %1440 = vmatprep.subr.bf16.mxu0 0
    %1441 = vmatpush1.bf16.msra.mxu0 0
    %1442 = vmatprep.subr.bf16.mxu0 0
    %1443 = vmatpush1.bf16.msra.mxu0 0
    %1444 = vmatprep.subr.bf16.mxu0 0
    %1445 = vmatpush1.bf16.msra.mxu0 0
    %1446 = vmatprep.subr.bf16.mxu0 0
    %1447 = vmatpush1.bf16.msra.mxu0 0
    %1448 = vmatprep.subr.bf16.mxu0 0
    %1449 = vmatpush1.bf16.msra.mxu0 0
    %1450 = vmatprep.subr.bf16.mxu0 0
    %1451 = vmatpush1.bf16.msra.mxu0 0
    %1452 = vmatprep.subr.bf16.mxu0 0
    %1453 = vmatpush1.bf16.msra.mxu0 0
    %1454 = vmatprep.subr.bf16.mxu0 0
    %1455 = vmatpush1.bf16.msra.mxu0 0
    %1456 = vmatprep.subr.bf16.mxu0 0
    %1457 = vmatpush1.bf16.msra.mxu0 0
    %1458 = vmatprep.subr.bf16.mxu0 0
    %1459 = vmatpush1.bf16.msra.mxu0 0
    %1460 = vmatprep.subr.bf16.mxu0 0
    %1461 = vmatpush1.bf16.msra.mxu0 0
    %1462 = vmatprep.subr.bf16.mxu0 0
    %1463 = vmatpush1.bf16.msra.mxu0 0
    %1464 = vmatprep.subr.bf16.mxu0 0
    %1465 = vmatpush1.bf16.msra.mxu0 0
    %1466 = vmatprep.subr.bf16.mxu0 0
    %1467 = vmatpush1.bf16.msra.mxu0 0
    %1468 = vmatprep.mubr.bf16.mxu0 0
    %1469 = vmatmul.mubr.bf16.gmra.mrb[0].mxu0 %v1434
    %v1470 = vpop.f32.mrb[0].mxu0
    %v1471 = vadd.f32 0.0, %v1470
    %v1472 = vpop.f32.mrb[0].mxu0
    %v1473 = vpop.f32.mrb[0].mxu0
    %v1474 = vadd.f32 0.0, %v1473
    %v1475 = vpop.f32.mrb[0].mxu0
    %1476 = vdwg.mxu0
    %v1477 = vrcp.pop %v1424
    %v1478 = vrcp.pop %v1427
    %v1479 = vmul.f32 %v1471, %v1477
    %v1480 = vmul.f32 %v1474, %v1478
    %1481 = vrot.lane.b32.xlu0 %v1316, 64
    %v1482 = vpop.permute.xlu0 %1481
    %v1484 = vadd.f32 %v1479, %v1482
    %v1485 = vadd.f32 %v1480, %v1482
    %v1486 = vsel %vm627, %v1484, 0.0
    %v1487 = vsel %vm627, %v1485, 0.0
    %v1488 = vadd.f32 %v1486, %v1487
    %v1489 = vrot.slane %v1488, 4
    %v1490 = vadd.f32 %v1488, %v1489
    %v1491 = vrot.slane %v1490, 2
    %v1492 = vadd.f32 %v1490, %v1491
    %v1493 = vrot.slane %v1492, 1
    %v1494 = vadd.f32 %v1492, %v1493
    %v1495 = vmul.f32 %v1494, %v355
    %v1496 = vmul.f32 %v1484, %v1484
    %v1497 = vmul.f32 %v1485, %v1485
    %v1498 = vsel %vm627, %v1496, 0.0
    %v1499 = vsel %vm627, %v1497, 0.0
    %v1500 = vadd.f32 %v1498, %v1499
    %v1501 = vrot.slane %v1500, 4
    %v1502 = vadd.f32 %v1500, %v1501
    %v1503 = vrot.slane %v1502, 2
    %v1504 = vadd.f32 %v1502, %v1503
    %v1505 = vrot.slane %v1504, 1
    %v1506 = vadd.f32 %v1504, %v1505
    %v1507 = vmul.f32 %v1506, %v355
    %v1508 = vmul.f32 %v1495, %v1495
    %v1509 = vsub.f32 %v1507, %v1508
    %v1510 = vsub.f32 %v1484, %v1495
    %v1511 = vsub.f32 %v1485, %v1495
    %v1512 = vadd.f32 %v1509, 1e-05
    %v1513 = vrsqrt.pop %v1512
    %v1514 = vmul.f32 %v1510, %v1513
    %v1515 = vmul.f32 %v1511, %v1513
    %1516 = vrot.lane.b32.xlu0 %v1354, 64
    %v1517 = vpop.permute.xlu0 %1516
    %v1519 = vmul.f32 %v1514, %v1517
    %v1520 = vmul.f32 %v1515, %v1517
    %1521 = vrot.lane.b32.xlu0 %v1362, 64
    %v1522 = vpop.permute.xlu0 %1521
    %v1524 = vadd.f32 %v1519, %v1522
    %v1525 = vadd.f32 %v1520, %v1522
    %v1526 = vmax.f32 %v1524, 0.0
    %v1527 = vmax.f32 %v1525, 0.0
    %1530 = vrot.lane.b32.xlu0 %v1526, 64
    %v1531 = vpop.permute.xlu0 %1530
    %1532 = vrot.lane.b32.xlu0 %v1527, 64
    %v1533 = vpop.permute.xlu0 %1532
    %vm1536 = vcmask 1048064
    %1537 = vst.msk [vmem:[#allocation4] sm:$0xff] %vm1536, %v1531
    %1538 = vst.msk [vmem:[#allocation4 + $0x8] sm:$0xff] %vm1536, %v1533
    %v1539 = vld [vmem:[#allocation4] sm:$0xff]
    %v1540 = vld [vmem:[#allocation4 + $0x8] sm:$0xff]
    %v1541 = vld [vmem:[%s2] sm:$0x3]
    %v1542 = vlaneseq
    %v1543 = vshrl.u32 %v1542, 7
    %v1544 = vsub.s32 0, %v1543
    %v1545 = vrot.slane %v1541, %v1544
    %1547 = vbcast.lane.b32.xlu0 %v1545, 256
    %v1548 = vpop.permute.xlu0 %1547
    %s1550 = sor.u32 256, 8
    %1551 = vbcast.lane.b32.xlu0 %v1545, %s1550
    %v1552 = vpop.permute.xlu0 %1551
    %v1553 = vlaneseq
    %v1554 = vshrl.u32 %v1553, 7
    %v1555 = vsub.s32 1, %v1554
    %v1556 = vrot.slane %v1541, %v1555
    %1558 = vbcast.lane.b32.xlu0 %v1556, 256
    %v1559 = vpop.permute.xlu0 %1558
    %s1561 = sor.u32 256, 8
    %1562 = vbcast.lane.b32.xlu0 %v1556, %s1561
    %v1563 = vpop.permute.xlu0 %1562
    %vm1564 = vcmp.gt.f32.partialorder %v1548, 0.0
    %vm1565 = vcmp.gt.f32.partialorder %v1552, 0.0
    %vm1566 = vcmp.gt.f32.partialorder %v1559, 0.0
    %vm1567 = vcmp.gt.f32.partialorder %v1563, 0.0
    %v1568 = vsel %vm1564, 1, 0
    %v1569 = vsel %vm1565, 1, 0
    %v1570 = vsel %vm1566, 1, 0
    %v1571 = vsel %vm1567, 1, 0
    %vm1572 = vcmp.eq.s32.totalorder %v1568, 1
    %vm1573 = vcmp.eq.s32.totalorder %v1569, 1
    %vm1574 = vcmp.eq.s32.totalorder %v1570, 1
    %vm1575 = vcmp.eq.s32.totalorder %v1571, 1
    %v1576 = vsel %vm1572, %v1539, -1e+30
    %v1577 = vsel %vm1573, %v1540, -1e+30
    %v1578 = vsel %vm1574, %v1539, -1e+30
    %v1579 = vsel %vm1575, %v1540, -1e+30
    %v1580 = vmax.f32 %v1576, %v1577
    %v1581 = vrot.slane %v1580, 4
    %v1582 = vmax.f32 %v1580, %v1581
    %v1583 = vrot.slane %v1582, 2
    %v1584 = vmax.f32 %v1582, %v1583
    %v1585 = vrot.slane %v1584, 1
    %v1586 = vmax.f32 %v1584, %v1585
    %v1587 = vmax.f32 %v1578, %v1579
    %v1588 = vrot.slane %v1587, 4
    %v1589 = vmax.f32 %v1587, %v1588
    %v1590 = vrot.slane %v1589, 2
    %v1591 = vmax.f32 %v1589, %v1590
    %v1592 = vrot.slane %v1591, 1
    %v1593 = vmax.f32 %v1591, %v1592
    %v1594 = vld [vmem:[%s18] sm:$0xff]
    %v1595 = vld [vmem:[%s18 + $0x8] sm:$0xff]
    %v1596 = vld [vmem:[%s18 + $0x10] sm:$0xff]
    %v1597 = vld [vmem:[%s18 + $0x18] sm:$0xff]
    %v1598 = vld [vmem:[%s18 + $0x20] sm:$0xff]
    %v1599 = vld [vmem:[%s18 + $0x28] sm:$0xff]
    %v1600 = vld [vmem:[%s18 + $0x30] sm:$0xff]
    %v1601 = vld [vmem:[%s18 + $0x38] sm:$0xff]
    %v1602 = vld [vmem:[%s18 + $0x40] sm:$0xff]
    %v1603 = vld [vmem:[%s18 + $0x48] sm:$0xff]
    %v1604 = vld [vmem:[%s18 + $0x50] sm:$0xff]
    %v1605 = vld [vmem:[%s18 + $0x58] sm:$0xff]
    %v1606 = vld [vmem:[%s18 + $0x60] sm:$0xff]
    %v1607 = vld [vmem:[%s18 + $0x68] sm:$0xff]
    %v1608 = vld [vmem:[%s18 + $0x70] sm:$0xff]
    %v1609 = vld [vmem:[%s18 + $0x78] sm:$0xff]
    %v1610 = vld [vmem:[%s19] sm:$0x1]
    %v1612 = vlaneseq
    %v1613 = vshrl.u32 %v1612, 7
    %v1614 = vsub.s32 0, %v1613
    %v1615 = vrot.slane %v1610, %v1614
    %v1619 = vsel %vm246, %v1593, %v1586
    %1621 = vmatprep.subr.mxu0 0.0
    %1622 = vmatpush1.msra.mxu0 %v1594
    %1623 = vmatprep.subr.mxu0 0.0
    %1624 = vmatpush1.msra.mxu0 %v1595
    %1625 = vmatprep.subr.mxu0 0.0
    %1626 = vmatpush1.msra.mxu0 %v1596
    %1627 = vmatprep.subr.mxu0 0.0
    %1628 = vmatpush1.msra.mxu0 %v1597
    %1629 = vmatprep.subr.mxu0 0.0
    %1630 = vmatpush1.msra.mxu0 %v1598
    %1631 = vmatprep.subr.mxu0 0.0
    %1632 = vmatpush1.msra.mxu0 %v1599
    %1633 = vmatprep.subr.mxu0 0.0
    %1634 = vmatpush1.msra.mxu0 %v1600
    %1635 = vmatprep.subr.mxu0 0.0
    %1636 = vmatpush1.msra.mxu0 %v1601
    %1637 = vmatprep.subr.mxu0 0.0
    %1638 = vmatpush1.msra.mxu0 %v1602
    %1639 = vmatprep.subr.mxu0 0.0
    %1640 = vmatpush1.msra.mxu0 %v1603
    %1641 = vmatprep.subr.mxu0 0.0
    %1642 = vmatpush1.msra.mxu0 %v1604
    %1643 = vmatprep.subr.mxu0 0.0
    %1644 = vmatpush1.msra.mxu0 %v1605
    %1645 = vmatprep.subr.mxu0 0.0
    %1646 = vmatpush1.msra.mxu0 %v1606
    %1647 = vmatprep.subr.mxu0 0.0
    %1648 = vmatpush1.msra.mxu0 %v1607
    %1649 = vmatprep.subr.mxu0 0.0
    %1650 = vmatpush1.msra.mxu0 %v1608
    %1651 = vmatprep.subr.mxu0 0.0
    %1652 = vmatpush1.msra.mxu0 %v1609
    %1653 = vmatprep.subr.mxu0 0.0
    %1654 = vmatpush1.msra.mxu0 0.0
    %1655 = vmatprep.subr.mxu0 0.0
    %1656 = vmatpush1.msra.mxu0 0.0
    %1657 = vmatprep.subr.mxu0 0.0
    %1658 = vmatpush1.msra.mxu0 0.0
    %1659 = vmatprep.subr.mxu0 0.0
    %1660 = vmatpush1.msra.mxu0 0.0
    %1661 = vmatprep.subr.mxu0 0.0
    %1662 = vmatpush1.msra.mxu0 0.0
    %1663 = vmatprep.subr.mxu0 0.0
    %1664 = vmatpush1.msra.mxu0 0.0
    %1665 = vmatprep.subr.mxu0 0.0
    %1666 = vmatpush1.msra.mxu0 0.0
    %1667 = vmatprep.subr.mxu0 0.0
    %1668 = vmatpush1.msra.mxu0 0.0
    %1669 = vmatprep.subr.mxu0 0.0
    %1670 = vmatpush1.msra.mxu0 0.0
    %1671 = vmatprep.subr.mxu0 0.0
    %1672 = vmatpush1.msra.mxu0 0.0
    %1673 = vmatprep.subr.mxu0 0.0
    %1674 = vmatpush1.msra.mxu0 0.0
    %1675 = vmatprep.subr.mxu0 0.0
    %1676 = vmatpush1.msra.mxu0 0.0
    %1677 = vmatprep.subr.mxu0 0.0
    %1678 = vmatpush1.msra.mxu0 0.0
    %1679 = vmatprep.subr.mxu0 0.0
    %1680 = vmatpush1.msra.mxu0 0.0
    %1681 = vmatprep.subr.mxu0 0.0
    %1682 = vmatpush1.msra.mxu0 0.0
    %1683 = vmatprep.subr.mxu0 0.0
    %1684 = vmatpush1.msra.mxu0 0.0
    %1685 = vmatprep.mubr.f32.mxu0 0.0
    %1686 = vmatmul.mubr.f32.gmra.mrb[0].mxu0 %v1619
    %v1687 = vpop.f32.mrb[0].mxu0
    %v1688 = vadd.f32 %v1615, %v1687
    %v1689 = vpop.f32.mrb[0].mxu0
    %1690 = vdwg.mxu0
    %vm1691 = vcmask 74752
    %1692 = vst.msk [vmem:[#allocation5] sm:$0x3] %vm1691, %v1688
    // Predicated region
    $region82: #{tpu_custom_call.1} parent=1 // pred_check
      _
    $region83: #{tpu_custom_call.1} parent=1 // pred_check_branch
      %1694 = sbr.rel (0) target = $region85
    $region84: #{tpu_custom_call.1} parent=1 // pred_region
      %s1696 = ssub.s32 32, 32
      %1697 = vsyncadd [#allocation6], %s1696
      %s1699 = sshll.u32 [#allocation5], 4
      %s1700 = int_to_ptr.vmem [resolvable:$true] %s1699
      %1702 = dma.vmem_to_hbm [thread:$0]  %s1700, 32, %s20, [#allocation6]
    $region85: #{tpu_custom_call.1} parent=1 // pred_fallthru
      _
    // Predicated region
    $region86: #{tpu_custom_call.1} parent=1 // pred_check
      _
    $region87: #{tpu_custom_call.1} parent=1 // pred_check_branch
      %1704 = sbr.rel (0) target = $region89
    $region88: #{tpu_custom_call.1} parent=1 // pred_region
      %1705 = dma.done [#allocation6], 32
    $region89: #{tpu_custom_call.1} parent=1 // pred_fallthru
      _
    %1706 = vsyncpa [#allocation6], 1

</llo_original>
